<compile_context>
chip_gen: v7x
topology: tpu7x:2x2x1
jax: 0.10.0
libtpu: 0.0.40
codegen_flags: <defaults>
</compile_context>

<pallas_src>
import functools

import jax
import jax.numpy as jnp
from jax.experimental import pallas as pl
from jax.experimental.pallas import tpu as pltpu

LANE = 128
VMEM_LIMIT = 64 * 1024 * 1024  # explicit scoped-VMEM budget (<= physical on all gens)


# --------------------------------------------------------------------------- #
# wrapper-side helpers (pure layout / tiny math)
# --------------------------------------------------------------------------- #
def _ru(x, m=LANE):
    return ((x + m - 1) // m) * m


def step_cnt(base, stride, size):
    return (size - base) // stride + 1


def timestep_embedding(t, dim, max_period=10000.0):
    half = dim // 2
    freqs = jnp.exp(-jnp.log(max_period) * jnp.arange(half, dtype=jnp.float32) / half)
    args = t.astype(jnp.float32)[:, None] * freqs[None, :]
    return jnp.concatenate([jnp.cos(args), jnp.sin(args)], axis=-1)


def _im2col_3x3(x):
    # x: (B, C, H, W), 3x3 conv, stride 1, padding 1 -> (B, H*W, C*9)
    B, C, H, W = x.shape
    xp = jnp.pad(x, ((0, 0), (0, 0), (1, 1), (1, 1)))
    cols = []
    for dh in range(3):
        for dw in range(3):
            cols.append(xp[:, :, dh:dh + H, dw:dw + W])
    cols = jnp.stack(cols, axis=2)                 # (B, C, 9, H, W)
    cols = cols.transpose(0, 3, 4, 1, 2)           # (B, H, W, C, 9)
    return cols.reshape(B, H * W, C * 9)


def _sincos_1d(pos, dim):
    omega = jnp.arange(dim // 2, dtype=jnp.float32) / (dim / 2.0)
    omega = 1.0 / (10000.0 ** omega)
    out = pos[:, None] * omega[None, :]
    return jnp.concatenate([jnp.sin(out), jnp.cos(out)], axis=-1)


def pos_emb_2d(MH, MW, nh, nw, dim, pos):
    ii, jj, ph, pw = jnp.meshgrid(jnp.arange(MH), jnp.arange(MW),
                                  jnp.arange(nh), jnp.arange(nw), indexing="ij")
    rows = (ii * nh + ph).reshape(-1).astype(jnp.float32) + float(pos[0])
    cols = (jj * nw + pw).reshape(-1).astype(jnp.float32) + float(pos[1])
    return jnp.concatenate([_sincos_1d(rows, dim // 2),
                            _sincos_1d(cols, dim // 2)], axis=-1)  # (T, dim)


def _pad_last(a, target):
    pad = target - a.shape[-1]
    if pad <= 0:
        return a
    return jnp.pad(a, [(0, 0)] * (a.ndim - 1) + [(0, pad)])


def _pad2(a, rows, cols):
    return jnp.pad(a, ((0, rows - a.shape[0]), (0, cols - a.shape[1])))


# --------------------------------------------------------------------------- #
# kernel 1: base_model.unet stand-in, tiled over (batch, row-tiles)
# --------------------------------------------------------------------------- #
def _unet_kernel(cols_ref, tsin_ref, tw_ref, tb_ref, w1_ref, b1_ref,
                 w2_ref, b2_ref, out_ref):
    n_id = pl.program_id(0)
    # time conditioning for ALL batch rows (tiny), then select row n_id (robust
    # mask-select; avoids dynamic sublane ref slicing). Padded lanes stay 0.
    temb = jnp.dot(tsin_ref[...].astype(jnp.bfloat16), tw_ref[...],
                   preferred_element_type=jnp.float32) + tb_ref[...]
    temb = jax.nn.silu(temb)                                    # (N, K2)
    rows = jax.lax.broadcasted_iota(jnp.int32, temb.shape, 0)
    temb = jnp.sum(jnp.where(rows == n_id, temb, 0.0), axis=0, keepdims=True)
    # 3x3 conv (im2col) as one bf16 MXU matmul on this row tile
    h = jnp.dot(cols_ref[...], w1_ref[...],
                preferred_element_type=jnp.float32) + b1_ref[...] + temb
    h = jax.nn.silu(h)
    # 1x1 conv; lane-padded output, bf16 writeback (halves HBM write traffic)
    s = jnp.dot(h.astype(jnp.bfloat16), w2_ref[...],
                preferred_element_type=jnp.float32) + b2_ref[...]
    out_ref[...] = s.astype(out_ref.dtype)


def _row_tile(rows_per_n, max_tile=2048):
    if rows_per_n <= max_tile:
        return rows_per_n
    for cand in range(max_tile - max_tile % 8, 7, -8):
        if rows_per_n % cand == 0:
            return cand
    return rows_per_n


def run_unet(cols, tsin, tw, tb, w1, b1, w2, b2, n_batch):
    rows_total, k1 = cols.shape
    k3 = w2.shape[1]
    rows_per_n = rows_total // n_batch
    tile = _row_tile(rows_per_n)
    tiles_per_n = rows_per_n // tile

    def const(shape):
        zeros = (0,) * len(shape)
        return pl.BlockSpec(shape, lambda n, i: zeros)

    def row_spec(width):
        return pl.BlockSpec((tile, width), lambda n, i: (n * tiles_per_n + i, 0))

    return pl.pallas_call(
        _unet_kernel,
        out_shape=jax.ShapeDtypeStruct((rows_total, k3), jnp.bfloat16),
        grid=(n_batch, tiles_per_n),
        in_specs=[row_spec(k1),
                  const(tsin.shape), const(tw.shape), const(tb.shape),
                  const(w1.shape), const(b1.shape),
                  const(w2.shape), const(b2.shape)],
        out_specs=row_spec(k3),
        compiler_params=pltpu.CompilerParams(
            dimension_semantics=("parallel", "parallel"),
            vmem_limit_bytes=VMEM_LIMIT),
    )(cols, tsin, tw, tb, w1, b1, w2, b2)


# --------------------------------------------------------------------------- #
# kernel 2: fused prep (t-MLP + x_c embed -> c, patch-embed + pos-emb -> h0)
# --------------------------------------------------------------------------- #
def _prep_kernel(tsin_ref, xcm_ref, tok_ref, pos_ref,
                 tw1_ref, tb1_ref, tw2_ref, tb2_ref, xcw_ref, xcb_ref,
                 pew_ref, peb_ref, c_ref, h0_ref):
    h = jnp.dot(tsin_ref[...].astype(jnp.bfloat16), tw1_ref[...],
                preferred_element_type=jnp.float32) + tb1_ref[...]
    h = jax.nn.silu(h)
    temb = jnp.dot(h.astype(jnp.bfloat16), tw2_ref[...],
                   preferred_element_type=jnp.float32) + tb2_ref[...]
    cemb = jnp.dot(xcm_ref[...].astype(jnp.bfloat16), xcw_ref[...],
                   preferred_element_type=jnp.float32) + xcb_ref[...]
    c_ref[...] = temb + cemb
    emb = jnp.dot(tok_ref[...], pew_ref[...],
                  preferred_element_type=jnp.float32) + peb_ref[...] + pos_ref[...]
    h0_ref[...] = emb.astype(jnp.bfloat16)


def run_prep(tsin, xcm, tok, pos, tw1, tb1, tw2, tb2, xcw, xcb, pew, peb):
    n, d = tsin.shape
    nt = tok.shape[0]
    vspec = pl.BlockSpec(memory_space=pltpu.MemorySpace.VMEM)
    return pl.pallas_call(
        _prep_kernel,
        out_shape=(jax.ShapeDtypeStruct((n, d), jnp.float32),
                   jax.ShapeDtypeStruct((nt, d), jnp.bfloat16)),
        in_specs=[vspec] * 12,
        out_specs=(vspec, vspec),
        compiler_params=pltpu.CompilerParams(vmem_limit_bytes=VMEM_LIMIT),
    )(tsin, xcm, tok, pos, tw1, tb1, tw2, tb2, xcw, xcb, pew, peb)


# --------------------------------------------------------------------------- #
# kernel 3: CondDiTi = depth adaLN DiT blocks + final layer
# grid = (batch, depth); tokens of one batch element resident in VMEM scratch
# --------------------------------------------------------------------------- #
def _layer_norm(v):
    mu = jnp.mean(v, axis=-1, keepdims=True)
    var = jnp.mean(jnp.square(v - mu), axis=-1, keepdims=True)
    return (v - mu) * jax.lax.rsqrt(var + 1e-6)


def _dit_kernel(h0_ref, c_ref, wada_ref, bada_ref, wqkv_ref, bqkv_ref,
                wproj_ref, bproj_ref, wfc1_ref, bfc1_ref, wfc2_ref, bfc2_ref,
                fwada_ref, fbada_ref, fwout_ref, fbout_ref,
                out_ref, h_sc, *, num_heads):
    b_id = pl.program_id(0)
    layer = pl.program_id(1)
    t, d = h_sc.shape
    hd = d // num_heads

    # ---- layer 0: load the pre-embedded tokens of this batch element ----
    @pl.when(layer == 0)
    def _load():
        h_sc[...] = h0_ref[...].astype(jnp.float32)

    h = h_sc[...]                                               # (T, D) f32

    # conditioning row for this batch element (resident c; mask-select the row)
    c_all = jax.nn.silu(c_ref[...])
    rows = jax.lax.broadcasted_iota(jnp.int32, c_all.shape, 0)
    c_row = jnp.sum(jnp.where(rows == b_id, c_all, 0.0), axis=0, keepdims=True)
    cb = c_row.astype(jnp.bfloat16)                             # (1, D)

    # fused adaLN modulation: one (1,D)x(D,6D) matmul, lane-sliced into 6 pieces
    mods = (jnp.dot(cb, wada_ref[...], preferred_element_type=jnp.float32)
            + bada_ref[...])
    sh_msa, sc_msa, g_msa, sh_mlp, sc_mlp, g_mlp = [
        mods[:, i * d:(i + 1) * d] for i in range(6)]

    # ---- multi-head self-attention (true head-dim contractions) ----
    xm = _layer_norm(h) * (1.0 + sc_msa) + sh_msa               # (T, D)
    qkv = (jnp.dot(xm.astype(jnp.bfloat16), wqkv_ref[...],
                   preferred_element_type=jnp.float32) + bqkv_ref[...])
    q = qkv[:, 0:d] * (hd ** -0.5)
    k = qkv[:, d:2 * d]
    v = qkv[:, 2 * d:3 * d]
    wproj = wproj_ref[...]                                      # (D, D) bf16

    # NOTE: head slices are disjoint, static lane slices; per-head outputs are
    # folded into the output projection via the matching sublane rows of W_proj.
    # TODO(synk): at production T add flash-style K/V tiling (online softmax)
    # so no (T, T) score tensor is materialized per head; pad T to 128.
    o = jnp.zeros((t, d), jnp.float32)
    for hh in range(num_heads):
        lo, hi = hh * hd, (hh + 1) * hd
        q_h = q[:, lo:hi].astype(jnp.bfloat16)                  # (T, hd)
        k_h = k[:, lo:hi].astype(jnp.bfloat16)
        v_h = v[:, lo:hi].astype(jnp.bfloat16)
        s = jax.lax.dot_general(q_h, k_h, (((1,), (1,)), ((), ())),
                                preferred_element_type=jnp.float32)   # (T, T)
        s = s - jnp.max(s, axis=-1, keepdims=True)
        p = jnp.exp(s)
        p = p * pl.reciprocal(jnp.sum(p, axis=-1, keepdims=True), approx=True)
        att_h = jnp.dot(p.astype(jnp.bfloat16), v_h,
                        preferred_element_type=jnp.float32)            # (T, hd)
        o = o + jnp.dot(att_h.astype(jnp.bfloat16), wproj[lo:hi, :],
                        preferred_element_type=jnp.float32)            # (T, D)
    o = o + bproj_ref[...]
    h = h + g_msa * o

    # ---- MLP ----
    xm2 = _layer_norm(h) * (1.0 + sc_mlp) + sh_mlp
    m = (jnp.dot(xm2.astype(jnp.bfloat16), wfc1_ref[...],
                 preferred_element_type=jnp.float32) + bfc1_ref[...])
    m = jax.nn.gelu(m, approximate=True)
    m = (jnp.dot(m.astype(jnp.bfloat16), wfc2_ref[...],
                 preferred_element_type=jnp.float32) + bfc2_ref[...])
    h = h + g_mlp * m
    h_sc[...] = h

    # ---- final adaLN layer fused into the last depth step (lane-dense out) ----
    @pl.when(layer == pl.num_programs(1) - 1)
    def _final():
        fm = (jnp.dot(cb, fwada_ref[...], preferred_element_type=jnp.float32)
              + fbada_ref[...])
        shift, scale = fm[:, 0:d], fm[:, d:2 * d]
        xf = _layer_norm(h) * (1.0 + scale) + shift
        y = (jnp.dot(xf.astype(jnp.bfloat16), fwout_ref[...],
                     preferred_element_type=jnp.float32) + fbout_ref[...])
        out_ref[...] = y[None, :, :]


def run_dit(h0, c, p, depth, num_heads, out_pad):
    N, T, D = h0.shape
    dm = p["blk_wfc1"].shape[-1]

    # fuse adaLN-mod / qkv / final-adaLN weights wrapper-side (one wide matmul each)
    wada = p["blk_wada"].transpose(0, 2, 1, 3).reshape(depth, D, 6 * D).astype(jnp.bfloat16)
    bada = p["blk_bada"].transpose(0, 2, 1, 3).reshape(depth, 1, 6 * D)
    wqkv = p["blk_wqkv"].transpose(0, 2, 1, 3).reshape(depth, D, 3 * D).astype(jnp.bfloat16)
    bqkv = p["blk_bqkv"].transpose(0, 2, 1, 3).reshape(depth, 1, 3 * D)
    fwada = p["fin_wada"].transpose(1, 0, 2).reshape(D, 2 * D).astype(jnp.bfloat16)
    fbada = p["fin_bada"].transpose(1, 0, 2).reshape(1, 2 * D)
    fwout = _pad2(p["fin_wout"], D, out_pad).astype(jnp.bfloat16)
    fbout = _pad_last(p["fin_bout"], out_pad)

    def per_batch(shape):
        zeros = (0,) * len(shape)
        return pl.BlockSpec((None,) + shape, lambda b, l: (b,) + zeros)

    def per_layer(shape):
        zeros = (0,) * len(shape)
        return pl.BlockSpec((None,) + shape, lambda b, l: (l,) + zeros)

    def const(shape):
        zeros = (0,) * len(shape)
        return pl.BlockSpec(shape, lambda b, l: zeros)

    in_specs = [
        per_batch((T, D)),         # h0: pre-embedded tokens (bf16)
        const((N, D)),             # conditioning c (small, resident)
        per_layer((D, 6 * D)),     # fused adaLN mod weights
        per_layer((1, 6 * D)),
        per_layer((D, 3 * D)),     # fused qkv weights
        per_layer((1, 3 * D)),
        per_layer((D, D)),         # attn out-proj
        per_layer((1, D)),
        per_layer((D, dm)),        # mlp fc1
        per_layer((1, dm)),
        per_layer((dm, D)),        # mlp fc2
        per_layer((1, D)),
        const((D, 2 * D)),         # final adaLN
        const((1, 2 * D)),
        const((D, out_pad)),       # final projection (lane-padded)
        const((1, out_pad)),
    ]
    kernel = functools.partial(_dit_kernel, num_heads=num_heads)
    return pl.pallas_call(
        kernel,
        out_shape=jax.ShapeDtypeStruct((N, T, out_pad), jnp.float32),
        grid=(N, depth),
        in_specs=in_specs,
        out_specs=pl.BlockSpec((1, T, out_pad), lambda b, l: (b, 0, 0)),
        scratch_shapes=[pltpu.VMEM((T, D), jnp.float32)],
        compiler_params=pltpu.CompilerParams(
            dimension_semantics=("parallel", "arbitrary"),
            vmem_limit_bytes=VMEM_LIMIT),
    )(h0, c,
      wada, bada, wqkv, bqkv,
      p["blk_wproj"].astype(jnp.bfloat16), p["blk_bproj"],
      p["blk_wfc1"].astype(jnp.bfloat16), p["blk_bfc1"],
      p["blk_wfc2"].astype(jnp.bfloat16), p["blk_bfc2"],
      fwada, fbada, fwout, fbout)


# --------------------------------------------------------------------------- #
# parameters (deterministic synthetic init)
# --------------------------------------------------------------------------- #
def _init(key, shape, scale=0.02):
    return scale * jax.random.normal(key, shape, dtype=jnp.float32)


def init_params(key, patch_size, hidden, depth, mlp_ratio,
                in_channels=3, out_channels=3, cmid=8):
    ks = iter(jax.random.split(key, 24))
    D = hidden
    dm = hidden * mlp_ratio
    pdim = in_channels * patch_size * patch_size
    podim = out_channels * patch_size * patch_size
    p = {}
    # base_model.unet stand-in (time-conditioned 3x3 conv -> 1x1 conv)
    p["unet_w1"] = _init(next(ks), (2 * in_channels * 9, cmid))
    p["unet_b1"] = jnp.zeros((1, cmid), jnp.float32)
    p["unet_tw"] = _init(next(ks), (cmid, cmid))
    p["unet_tb"] = jnp.zeros((1, cmid), jnp.float32)
    p["unet_w2"] = _init(next(ks), (cmid, out_channels))
    p["unet_b2"] = jnp.zeros((1, out_channels), jnp.float32)
    # CondDiTi stand-in
    p["pe_w"] = _init(next(ks), (pdim, D))
    p["pe_b"] = jnp.zeros((1, D), jnp.float32)
    p["t_w1"] = _init(next(ks), (D, D))
    p["t_b1"] = jnp.zeros((1, D), jnp.float32)
    p["t_w2"] = _init(next(ks), (D, D))
    p["t_b2"] = jnp.zeros((1, D), jnp.float32)
    p["xc_w"] = _init(next(ks), (in_channels, D))
    p["xc_b"] = jnp.zeros((1, D), jnp.float32)
    p["blk_wada"] = _init(next(ks), (depth, 6, D, D))
    p["blk_bada"] = jnp.zeros((depth, 6, 1, D), jnp.float32)
    p["blk_wqkv"] = _init(next(ks), (depth, 3, D, D))
    p["blk_bqkv"] = jnp.zeros((depth, 3, 1, D), jnp.float32)
    p["blk_wproj"] = _init(next(ks), (depth, D, D))
    p["blk_bproj"] = jnp.zeros((depth, 1, D), jnp.float32)
    p["blk_wfc1"] = _init(next(ks), (depth, D, dm))
    p["blk_bfc1"] = jnp.zeros((depth, 1, dm), jnp.float32)
    p["blk_wfc2"] = _init(next(ks), (depth, dm, D))
    p["blk_bfc2"] = jnp.zeros((depth, 1, D), jnp.float32)
    p["fin_wada"] = _init(next(ks), (2, D, D))
    p["fin_bada"] = jnp.zeros((2, 1, D), jnp.float32)
    p["fin_wout"] = _init(next(ks), (D, podim))
    p["fin_bout"] = jnp.zeros((1, podim), jnp.float32)
    return p


# --------------------------------------------------------------------------- #
# full forward (CondDiTiDevil.forward)
# --------------------------------------------------------------------------- #
def cond_diti_devil_forward(params, x, t, x_c, *, base_size, stride, patch_size,
                            hidden, depth, num_heads, mlp_ratio, pos=(0, 0)):
    N, C, H, W = x.shape
    MH = step_cnt(base_size, stride, H)
    MW = step_cnt(base_size, stride, W)
    M = MH * MW
    base = base_size
    out_c = params["unet_w2"].shape[1]

    # --- base_model.unet over all sliding windows (one tiled pallas_call) ---
    # TODO(synk): move the window gather + im2col in-kernel (manual DMA over
    # pl.ds(i*stride, base) windows) for production image sizes.
    wins = []
    for i in range(MH):
        for j in range(MW):
            l1, l2 = i * stride, j * stride
            xw = x[:, :, l1:l1 + base, l2:l2 + base]
            cw = x_c[:, :, l1:l1 + base, l2:l2 + base]
            wins.append(jnp.concatenate([xw, cw], axis=1))        # (N, 2C, base, base)
    wins = jnp.stack(wins, axis=1)                                 # (N, M, 2C, base, base)
    cols = _im2col_3x3(wins.reshape(N * M, 2 * C, base, base))     # (N*M, base^2, 2C*9)
    k1 = _ru(2 * C * 9)
    cols = _pad_last(cols.reshape(N * M * base * base, 2 * C * 9), k1).astype(jnp.bfloat16)

    cmid = params["unet_tw"].shape[0]
    k2 = _ru(cmid)
    k3 = _ru(out_c)
    tsin_u = _pad_last(timestep_embedding(t, cmid), k2)
    scores_flat = run_unet(
        cols, tsin_u,
        _pad2(params["unet_tw"], k2, k2).astype(jnp.bfloat16),
        _pad_last(params["unet_tb"], k2),
        _pad2(params["unet_w1"], k1, k2).astype(jnp.bfloat16),
        _pad_last(params["unet_b1"], k2),
        _pad2(params["unet_w2"], k2, k3).astype(jnp.bfloat16),
        _pad_last(params["unet_b2"], k3),
        N)                                                         # (N*M*base^2, k3) bf16

    scores = scores_flat[:, :out_c].reshape(N, MH, MW, base, base, out_c)
    diti_input = scores.transpose(0, 1, 2, 5, 3, 4)                # (N, MH, MW, C, base, base)

    # --- CondDiTi: patchify -> fused prep -> fused DiT blocks -> unpatchify ---
    P = patch_size
    nh = base // P
    T = M * nh * nh
    D = hidden
    xt = diti_input.reshape(N, MH, MW, out_c, nh, P, nh, P)
    xt = xt.transpose(0, 1, 2, 4, 6, 3, 5, 7)                      # N,MH,MW,nh,nw,C,P,P
    tokens = xt.reshape(N * T, out_c * P * P).astype(jnp.bfloat16)

    pe = pos_emb_2d(MH, MW, nh, nh, D, pos)                        # (T, D), add_pos_emb=True
    pos_tiled = jnp.tile(pe, (N, 1))                               # (N*T, D)

    c, h0 = run_prep(
        timestep_embedding(t, D), jnp.mean(x_c, axis=(2, 3)),
        tokens, pos_tiled,
        params["t_w1"].astype(jnp.bfloat16), params["t_b1"],
        params["t_w2"].astype(jnp.bfloat16), params["t_b2"],
        params["xc_w"].astype(jnp.bfloat16), params["xc_b"],
        params["pe_w"].astype(jnp.bfloat16), params["pe_b"])       # (N,D) f32, (N*T,D) bf16

    podim = out_c * P * P
    out_pad = _ru(podim)
    out3 = run_dit(h0.reshape(N, T, D), c, params, depth, num_heads, out_pad)

    out = out3[:, :, :podim].reshape(N, MH, MW, nh, nh, out_c, P, P)
    out = out.transpose(0, 1, 2, 5, 3, 6, 4, 7).reshape(N, MH, MW, out_c, base, base)
    return out


if __name__ == "__main__":
    key = jax.random.PRNGKey(0)
    N, C, H, W = 2, 3, 16, 16
    base_size, stride, patch_size = 8, 4, 4
    hidden, depth, num_heads, mlp_ratio = 32, 2, 4, 2

    kx, kc, kp = jax.random.split(key, 3)
    x = jax.random.normal(kx, (N, C, H, W), jnp.float32)
    x_c = jax.random.normal(kc, (N, C, H, W), jnp.float32)
    t = jnp.array([10.0, 500.0], jnp.float32)

    params = init_params(kp, patch_size, hidden, depth, mlp_ratio,
                         in_channels=C, out_channels=3)

    out = cond_diti_devil_forward(params, x, t, x_c,
                                  base_size=base_size, stride=stride,
                                  patch_size=patch_size, hidden=hidden,
                                  depth=depth, num_heads=num_heads,
                                  mlp_ratio=mlp_ratio, pos=(0, 0))
    jax.block_until_ready(out)
    assert out.shape == (N, 3, 3, 3, base_size, base_size), out.shape
    print("KERNEL_OK")
</pallas_src>

<mosaic_0001>
module attributes {stable_mosaic.version = 11 : i64} {
  func.func @_unet_kernel(%arg0: i32, %arg1: i32, %arg2: memref<576x128xbf16, #tpu.memory_space<vmem>>, %arg3: memref<2x128xf32, #tpu.memory_space<vmem>>, %arg4: memref<128x128xbf16, #tpu.memory_space<vmem>>, %arg5: memref<1x128xf32, #tpu.memory_space<vmem>>, %arg6: memref<128x128xbf16, #tpu.memory_space<vmem>>, %arg7: memref<1x128xf32, #tpu.memory_space<vmem>>, %arg8: memref<128x128xbf16, #tpu.memory_space<vmem>>, %arg9: memref<1x128xf32, #tpu.memory_space<vmem>>, %arg10: memref<576x128xbf16, #tpu.memory_space<vmem>>) attributes {dimension_semantics = [#tpu.dimension_semantics<parallel>, #tpu.dimension_semantics<parallel>], iteration_bounds = array<i64: 2, 1>, scalar_prefetch = 0 : i64, scratch_operands = 0 : i64, tpu.core_type = #tpu.core_type<tc>, window_params = [{transform_indices = @transform_0, window_bounds = array<i64: 576, 128>}, {pipeline_mode = #tpu.pipeline_mode<synchronous>, transform_indices = @transform_1, window_bounds = array<i64: 2, 128>}, {pipeline_mode = #tpu.pipeline_mode<synchronous>, transform_indices = @transform_2, window_bounds = array<i64: 128, 128>}, {pipeline_mode = #tpu.pipeline_mode<synchronous>, transform_indices = @transform_3, window_bounds = array<i64: 1, 128>}, {pipeline_mode = #tpu.pipeline_mode<synchronous>, transform_indices = @transform_4, window_bounds = array<i64: 128, 128>}, {pipeline_mode = #tpu.pipeline_mode<synchronous>, transform_indices = @transform_5, window_bounds = array<i64: 1, 128>}, {pipeline_mode = #tpu.pipeline_mode<synchronous>, transform_indices = @transform_6, window_bounds = array<i64: 128, 128>}, {pipeline_mode = #tpu.pipeline_mode<synchronous>, transform_indices = @transform_7, window_bounds = array<i64: 1, 128>}, {transform_indices = @transform_8, window_bounds = array<i64: 576, 128>}]} {
    %c0 = arith.constant 0 : index
    %c0_0 = arith.constant 0 : index
    %0 = vector.load %arg3[%c0, %c0_0] : memref<2x128xf32, #tpu.memory_space<vmem>>, vector<2x128xf32>
    %1 = arith.truncf %0 : vector<2x128xf32> to vector<2x128xbf16>
    %c0_1 = arith.constant 0 : index
    %c0_2 = arith.constant 0 : index
    %2 = vector.load %arg4[%c0_1, %c0_2] : memref<128x128xbf16, #tpu.memory_space<vmem>>, vector<128x128xbf16>
    %cst = arith.constant dense<0.000000e+00> : vector<2x128xf32>
    %3 = tpu.matmul %1, %2, %cst {dimension_numbers = #tpu.dot_dimension_numbers<[1], [0], [0], [1], [0, 0, 1, 1], [], []>} : vector<2x128xbf16>, vector<128x128xbf16>, vector<2x128xf32> -> vector<2x128xf32>
    %c0_3 = arith.constant 0 : index
    %c0_4 = arith.constant 0 : index
    %4 = vector.load %arg5[%c0_3, %c0_4] : memref<1x128xf32, #tpu.memory_space<vmem>>, vector<1x128xf32>
    %5 = vector.broadcast %4 : vector<1x128xf32> to vector<2x128xf32>
    %6 = arith.addf %3, %5 : vector<2x128xf32>
    %7 = arith.negf %6 : vector<2x128xf32>
    %8 = math.exp %7 : vector<2x128xf32>
    %cst_5 = arith.constant 1.000000e+00 : f32
    %9 = vector.broadcast %cst_5 : f32 to vector<2x128xf32>
    %10 = arith.addf %9, %8 : vector<2x128xf32>
    %11 = arith.divf %9, %10 : vector<2x128xf32>
    %12 = arith.mulf %6, %11 : vector<2x128xf32>
    %13 = tpu.iota {dimensions = array<i32: 0>} : vector<2x128xi32>
    %14 = vector.broadcast %arg0 : i32 to vector<2x128xi32>
    %15 = arith.cmpi eq, %13, %14 : vector<2x128xi32>
    %cst_6 = arith.constant 0.000000e+00 : f32
    %16 = vector.broadcast %cst_6 : f32 to vector<2x128xf32>
    %17 = arith.select %15, %12, %16 : vector<2x128xi1>, vector<2x128xf32>
    %cst_7 = arith.constant dense<0.000000e+00> : vector<128xf32>
    %18 = vector.multi_reduction <add>, %17, %cst_7 [0] : vector<2x128xf32> to vector<128xf32>
    %19 = vector.shape_cast %18 : vector<128xf32> to vector<1x128xf32>
    %c0_8 = arith.constant 0 : index
    %c0_9 = arith.constant 0 : index
    %20 = vector.load %arg2[%c0_8, %c0_9] : memref<576x128xbf16, #tpu.memory_space<vmem>>, vector<576x128xbf16>
    %c0_10 = arith.constant 0 : index
    %c0_11 = arith.constant 0 : index
    %21 = vector.load %arg6[%c0_10, %c0_11] : memref<128x128xbf16, #tpu.memory_space<vmem>>, vector<128x128xbf16>
    %cst_12 = arith.constant dense<0.000000e+00> : vector<576x128xf32>
    %22 = tpu.matmul %20, %21, %cst_12 {dimension_numbers = #tpu.dot_dimension_numbers<[1], [0], [0], [1], [0, 0, 1, 1], [], []>} : vector<576x128xbf16>, vector<128x128xbf16>, vector<576x128xf32> -> vector<576x128xf32>
    %c0_13 = arith.constant 0 : index
    %c0_14 = arith.constant 0 : index
    %23 = vector.load %arg7[%c0_13, %c0_14] : memref<1x128xf32, #tpu.memory_space<vmem>>, vector<1x128xf32>
    %24 = vector.broadcast %23 : vector<1x128xf32> to vector<576x128xf32>
    %25 = arith.addf %22, %24 : vector<576x128xf32>
    %26 = vector.broadcast %19 : vector<1x128xf32> to vector<576x128xf32>
    %27 = arith.addf %25, %26 : vector<576x128xf32>
    %28 = arith.negf %27 : vector<576x128xf32>
    %29 = math.exp %28 : vector<576x128xf32>
    %cst_15 = arith.constant 1.000000e+00 : f32
    %30 = vector.broadcast %cst_15 : f32 to vector<576x128xf32>
    %31 = arith.addf %30, %29 : vector<576x128xf32>
    %32 = arith.divf %30, %31 : vector<576x128xf32>
    %33 = arith.mulf %27, %32 : vector<576x128xf32>
    %34 = arith.truncf %33 : vector<576x128xf32> to vector<576x128xbf16>
    %c0_16 = arith.constant 0 : index
    %c0_17 = arith.constant 0 : index
    %35 = vector.load %arg8[%c0_16, %c0_17] : memref<128x128xbf16, #tpu.memory_space<vmem>>, vector<128x128xbf16>
    %cst_18 = arith.constant dense<0.000000e+00> : vector<576x128xf32>
    %36 = tpu.matmul %34, %35, %cst_18 {dimension_numbers = #tpu.dot_dimension_numbers<[1], [0], [0], [1], [0, 0, 1, 1], [], []>} : vector<576x128xbf16>, vector<128x128xbf16>, vector<576x128xf32> -> vector<576x128xf32>
    %c0_19 = arith.constant 0 : index
    %c0_20 = arith.constant 0 : index
    %37 = vector.load %arg9[%c0_19, %c0_20] : memref<1x128xf32, #tpu.memory_space<vmem>>, vector<1x128xf32>
    %38 = vector.broadcast %37 : vector<1x128xf32> to vector<576x128xf32>
    %39 = arith.addf %36, %38 : vector<576x128xf32>
    %40 = arith.truncf %39 : vector<576x128xf32> to vector<576x128xbf16>
    %c0_21 = arith.constant 0 : index
    %c0_22 = arith.constant 0 : index
    %41 = vector.load %arg10[%c0_21, %c0_22] : memref<576x128xbf16, #tpu.memory_space<vmem>>, vector<576x128xbf16>
    tpu.vector_store %arg10[%c0_21, %c0_22], %40 {strides = array<i32>} : memref<576x128xbf16, #tpu.memory_space<vmem>>, vector<576x128xbf16>,
    return
  }
  func.func @transform_0(%arg0: i32, %arg1: i32) -> (i32, i32) {
    %c1_i32 = arith.constant 1 : i32
    %0 = arith.muli %arg0, %c1_i32 : i32
    %1 = arith.addi %0, %arg1 : i32
    %c0_i32 = arith.constant 0 : i32
    %c0_i32_0 = arith.constant 0 : i32
    return %1, %c0_i32 : i32, i32
  }
  func.func @transform_1(%arg0: i32, %arg1: i32) -> (i32, i32) {
    %c0_i32 = arith.constant 0 : i32
    %c0_i32_0 = arith.constant 0 : i32
    %c0_i32_1 = arith.constant 0 : i32
    return %c0_i32, %c0_i32_0 : i32, i32
  }
  func.func @transform_2(%arg0: i32, %arg1: i32) -> (i32, i32) {
    %c0_i32 = arith.constant 0 : i32
    %c0_i32_0 = arith.constant 0 : i32
    %c0_i32_1 = arith.constant 0 : i32
    return %c0_i32, %c0_i32_0 : i32, i32
  }
  func.func @transform_3(%arg0: i32, %arg1: i32) -> (i32, i32) {
    %c0_i32 = arith.constant 0 : i32
    %c0_i32_0 = arith.constant 0 : i32
    %c0_i32_1 = arith.constant 0 : i32
    return %c0_i32, %c0_i32_0 : i32, i32
  }
  func.func @transform_4(%arg0: i32, %arg1: i32) -> (i32, i32) {
    %c0_i32 = arith.constant 0 : i32
    %c0_i32_0 = arith.constant 0 : i32
    %c0_i32_1 = arith.constant 0 : i32
    return %c0_i32, %c0_i32_0 : i32, i32
  }
  func.func @transform_5(%arg0: i32, %arg1: i32) -> (i32, i32) {
    %c0_i32 = arith.constant 0 : i32
    %c0_i32_0 = arith.constant 0 : i32
    %c0_i32_1 = arith.constant 0 : i32
    return %c0_i32, %c0_i32_0 : i32, i32
  }
  func.func @transform_6(%arg0: i32, %arg1: i32) -> (i32, i32) {
    %c0_i32 = arith.constant 0 : i32
    %c0_i32_0 = arith.constant 0 : i32
    %c0_i32_1 = arith.constant 0 : i32
    return %c0_i32, %c0_i32_0 : i32, i32
  }
  func.func @transform_7(%arg0: i32, %arg1: i32) -> (i32, i32) {
    %c0_i32 = arith.constant 0 : i32
    %c0_i32_0 = arith.constant 0 : i32
    %c0_i32_1 = arith.constant 0 : i32
    return %c0_i32, %c0_i32_0 : i32, i32
  }
  func.func @transform_8(%arg0: i32, %arg1: i32) -> (i32, i32) {
    %c1_i32 = arith.constant 1 : i32
    %0 = arith.muli %arg0, %c1_i32 : i32
    %1 = arith.addi %0, %arg1 : i32
    %c0_i32 = arith.constant 0 : i32
    %c0_i32_0 = arith.constant 0 : i32
    return %1, %c0_i32 : i32, i32
  }
}

</mosaic_0001>

<llo_original>
// kernel: tpu_custom_call.1
$region0: #{tpu_custom_call.1}
  #allocation0 [shape = 'u32[]', space=smem, size = 0x4, offset = 0x4, fixed_abs, tag = 'smem constant byte address 0x4 - core index']
  #allocation1 [shape = 'u32[144,128]{1,0:T(1,128)}', space=vmem, size = 0x12000, scoped, tag = 'internal scratch']
  %s0 = inlined_call_operand.hbm [shape: bf16[1152,128], index: 0, kind: input, shape index: {}]
  %s1 = inlined_call_operand.hbm [shape: f32[2,128], index: 1, kind: input, shape index: {}]
  %s2 = inlined_call_operand.hbm [shape: bf16[128,128], index: 2, kind: input, shape index: {}]
  %s3 = inlined_call_operand.hbm [shape: f32[1,128], index: 3, kind: input, shape index: {}]
  %s4 = inlined_call_operand.hbm [shape: bf16[128,128], index: 4, kind: input, shape index: {}]
  %s5 = inlined_call_operand.hbm [shape: f32[1,128], index: 5, kind: input, shape index: {}]
  %s6 = inlined_call_operand.hbm [shape: bf16[128,128], index: 6, kind: input, shape index: {}]
  %s7 = inlined_call_operand.hbm [shape: f32[1,128], index: 7, kind: input, shape index: {}]
  %s8 = inlined_call_operand.hbm [shape: bf16[1152,128], index: 8, kind: output, shape index: {}]
  %s9 = sld [smem:[#allocation0]]
  $region97: #{tpu_custom_call.1} parent=0
    _
  %s11 = ssub.s32 1, %s9
  %s12 = scalar_select 0, %s11, %s9
  $region1: #{tpu_custom_call.1} parent=0
    #allocation2 [shape = 'u8[294912]{0}', space=vmem, size = 0x48000, scoped, tag = 'input window, operand 0']
    #allocation3 [shape = 's32[2]{0}', space=sflag, size = 0x8, scoped, tag = 'scoped memory for tpu_custom_call.1']
    #allocation4 [shape = 's32[2]{0}', space=sflag, size = 0x8, scoped, tag = 'scoped memory for tpu_custom_call.1']
    #allocation5 [shape = 'u8[1024]{0}', space=vmem, size = 0x400, scoped, tag = 'input window, operand 1, single buffered']
    #allocation6 [shape = 's32[1]{0}', space=sflag, size = 0x4, scoped, tag = 'scoped memory for tpu_custom_call.1']
    #allocation7 [shape = 'u8[32768]{0}', space=vmem, size = 0x8000, scoped, tag = 'input window, operand 2, single buffered']
    #allocation8 [shape = 'u8[512]{0}', space=vmem, size = 0x400, scoped, tag = 'input window, operand 3, single buffered']
    #allocation9 [shape = 's32[1]{0}', space=sflag, size = 0x4, scoped, tag = 'scoped memory for tpu_custom_call.1']
    #allocation10 [shape = 'u8[32768]{0}', space=vmem, size = 0x8000, scoped, tag = 'input window, operand 4, single buffered']
    #allocation11 [shape = 'u8[512]{0}', space=vmem, size = 0x400, scoped, tag = 'input window, operand 5, single buffered']
    #allocation12 [shape = 's32[1]{0}', space=sflag, size = 0x4, scoped, tag = 'scoped memory for tpu_custom_call.1']
    #allocation13 [shape = 'u8[32768]{0}', space=vmem, size = 0x8000, scoped, tag = 'input window, operand 6, single buffered']
    #allocation14 [shape = 'u8[512]{0}', space=vmem, size = 0x400, scoped, tag = 'input window, operand 7, single buffered']
    #allocation15 [shape = 's32[1]{0}', space=sflag, size = 0x4, scoped, tag = 'scoped memory for tpu_custom_call.1']
    #allocation16 [shape = 'u8[294912]{0}', space=vmem, size = 0x48000, scoped, tag = 'output window, operand 0']
    %13 = vsyncpa [#allocation3], 0
    %s14 = scalar_lea.sflag [#allocation3], 1
    %15 = vsyncpa %s14, 0
    %16 = vsyncpa [#allocation6], 0
    %17 = vsyncpa [#allocation9], 0
    %18 = vsyncpa [#allocation12], 0
    %19 = vsyncpa [#allocation15], 0
    %20 = vsyncpa [#allocation4], 0
    %s21 = scalar_lea.sflag [#allocation4], 1
    %22 = vsyncpa %s21, 0
    loop: start=0, step=1, limit=4
    $region2: #{tpu_custom_call.1} parent=1 // loop_pre_header
      _
    $region3: #{tpu_custom_call.1} parent=1 // loop_header
      %s24 = sphi 0, %s28
      %p25 = scmp.ge.s32.totalorder %s24, 4
      %s31 = sphi 0, %s43
      %s32 = sphi 0, %s39
      %s33 = sphi 0, %s31
      %s34 = sphi 0, %s32
      %s35 = sphi 0, %s33
      %s36 = sphi 0, %s34
      %s48 = sphi 0, %s50
      %s51 = sphi 0, %s48
      %s52 = sphi 0, %s51
      %s68 = sphi 0, %s52
      %s72 = sphi 0, %s72
      %s74 = sphi 0, %s72
      %s75 = sphi 0, %s74
      %s89 = sphi 0, %s75
      %s93 = sphi 0, %s93
      %s95 = sphi 0, %s93
      %s96 = sphi 0, %s95
      %s110 = sphi 0, %s96
      %s114 = sphi 0, %s114
      %s116 = sphi 0, %s114
      %s117 = sphi 0, %s116
      %s131 = sphi 0, %s117
      %s135 = sphi 0, %s135
      %s137 = sphi 0, %s135
      %s138 = sphi 0, %s137
      %s152 = sphi 0, %s138
      %s156 = sphi 0, %s156
      %s158 = sphi 0, %s156
      %s159 = sphi 0, %s158
      %s173 = sphi 0, %s159
      %s177 = sphi 0, %s177
      %s179 = sphi 0, %s177
      %s180 = sphi 0, %s179
      %s194 = sphi 0, %s180
      %s198 = sphi 0, %s198
      %s200 = sphi 0, %s198
      %s201 = sphi 0, %s200
      %s215 = sphi 0, %s201
      %s223 = sphi 0, %s225
      %s226 = sphi 0, %s223
      %s227 = sphi 0, %s226
      %s243 = sphi 0, %s227
    $region4: #{tpu_custom_call.1} parent=1 // loop_header_branch
      %27 = sbr.rel (%p25) target = $region8
    $region5: #{tpu_custom_call.1} parent=1 // loop_body
      %s29 = ssub.s32 %s24, 1
      %s30 = ssub.s32 %s24, 2
      %s37 = sadd.s32 1, %s32
      %p38 = scmp.ge.s32.totalorder %s37, 1
      %s39 = scalar_select %p38, 0, %s37
      %s40 = sadd.s32 1, %s31
      %s41 = scalar_select %p38, %s40, %s31
      %p42 = scmp.ge.s32.totalorder %s41, 2
      %s43 = scalar_select %p42, 0, %s41
      %s44 = sadd.s32 %s31, %s32
      %s45 = sadd.s32 %s43, %s39
      %s46 = ssub.s32 %s44, %s45
      %p47 = scmp.eq.s32.totalorder %s46, 0
      %s49 = sadd.s32 %s48, 1
      %s50 = scalar_select %p47, %s48, %s49
      %p53 = pneg %p47
      %p54 = scmp.eq.s32.totalorder %s24, 1
      %p55 = por %p53, %p54
      %p56 = scmp.ne.s32.totalorder %s48, %s51
      %p57 = scmp.eq.s32.totalorder %s24, 0
      %p58 = por %p56, %p57
      %p59 = scmp.ne.s32.totalorder %s48, %s51
      %p60 = scmp.eq.s32.totalorder %s29, 1
      %p61 = por %p59, %p60
      %p62 = scmp.ne.s32.totalorder %s51, %s52
      %p63 = scmp.eq.s32.totalorder %s29, 0
      %p64 = por %p62, %p63
      %p65 = scmp.ne.s32.totalorder %s51, %s52
      %p66 = scmp.eq.s32.totalorder %s30, 1
      %p67 = por %p65, %p66
      %p69 = scmp.ne.s32.totalorder %s52, %s68
      %p70 = scmp.eq.s32.totalorder %s30, 0
      %p71 = por %p69, %p70
      %s73 = sadd.s32 %s72, 1
      %p76 = scmp.eq.s32.totalorder %s24, 1
      %p77 = scmp.ne.s32.totalorder %s72, %s74
      %p78 = scmp.eq.s32.totalorder %s24, 0
      %p79 = por %p77, %p78
      %p80 = scmp.ne.s32.totalorder %s72, %s74
      %p81 = scmp.eq.s32.totalorder %s29, 1
      %p82 = por %p80, %p81
      %p83 = scmp.ne.s32.totalorder %s74, %s75
      %p84 = scmp.eq.s32.totalorder %s29, 0
      %p85 = por %p83, %p84
      %p86 = scmp.ne.s32.totalorder %s74, %s75
      %p87 = scmp.eq.s32.totalorder %s30, 1
      %p88 = por %p86, %p87
      %p90 = scmp.ne.s32.totalorder %s75, %s89
      %p91 = scmp.eq.s32.totalorder %s30, 0
      %p92 = por %p90, %p91
      %s94 = sadd.s32 %s93, 1
      %p97 = scmp.eq.s32.totalorder %s24, 1
      %p98 = scmp.ne.s32.totalorder %s93, %s95
      %p99 = scmp.eq.s32.totalorder %s24, 0
      %p100 = por %p98, %p99
      %p101 = scmp.ne.s32.totalorder %s93, %s95
      %p102 = scmp.eq.s32.totalorder %s29, 1
      %p103 = por %p101, %p102
      %p104 = scmp.ne.s32.totalorder %s95, %s96
      %p105 = scmp.eq.s32.totalorder %s29, 0
      %p106 = por %p104, %p105
      %p107 = scmp.ne.s32.totalorder %s95, %s96
      %p108 = scmp.eq.s32.totalorder %s30, 1
      %p109 = por %p107, %p108
      %p111 = scmp.ne.s32.totalorder %s96, %s110
      %p112 = scmp.eq.s32.totalorder %s30, 0
      %p113 = por %p111, %p112
      %s115 = sadd.s32 %s114, 1
      %p118 = scmp.eq.s32.totalorder %s24, 1
      %p119 = scmp.ne.s32.totalorder %s114, %s116
      %p120 = scmp.eq.s32.totalorder %s24, 0
      %p121 = por %p119, %p120
      %p122 = scmp.ne.s32.totalorder %s114, %s116
      %p123 = scmp.eq.s32.totalorder %s29, 1
      %p124 = por %p122, %p123
      %p125 = scmp.ne.s32.totalorder %s116, %s117
      %p126 = scmp.eq.s32.totalorder %s29, 0
      %p127 = por %p125, %p126
      %p128 = scmp.ne.s32.totalorder %s116, %s117
      %p129 = scmp.eq.s32.totalorder %s30, 1
      %p130 = por %p128, %p129
      %p132 = scmp.ne.s32.totalorder %s117, %s131
      %p133 = scmp.eq.s32.totalorder %s30, 0
      %p134 = por %p132, %p133
      %s136 = sadd.s32 %s135, 1
      %p139 = scmp.eq.s32.totalorder %s24, 1
      %p140 = scmp.ne.s32.totalorder %s135, %s137
      %p141 = scmp.eq.s32.totalorder %s24, 0
      %p142 = por %p140, %p141
      %p143 = scmp.ne.s32.totalorder %s135, %s137
      %p144 = scmp.eq.s32.totalorder %s29, 1
      %p145 = por %p143, %p144
      %p146 = scmp.ne.s32.totalorder %s137, %s138
      %p147 = scmp.eq.s32.totalorder %s29, 0
      %p148 = por %p146, %p147
      %p149 = scmp.ne.s32.totalorder %s137, %s138
      %p150 = scmp.eq.s32.totalorder %s30, 1
      %p151 = por %p149, %p150
      %p153 = scmp.ne.s32.totalorder %s138, %s152
      %p154 = scmp.eq.s32.totalorder %s30, 0
      %p155 = por %p153, %p154
      %s157 = sadd.s32 %s156, 1
      %p160 = scmp.eq.s32.totalorder %s24, 1
      %p161 = scmp.ne.s32.totalorder %s156, %s158
      %p162 = scmp.eq.s32.totalorder %s24, 0
      %p163 = por %p161, %p162
      %p164 = scmp.ne.s32.totalorder %s156, %s158
      %p165 = scmp.eq.s32.totalorder %s29, 1
      %p166 = por %p164, %p165
      %p167 = scmp.ne.s32.totalorder %s158, %s159
      %p168 = scmp.eq.s32.totalorder %s29, 0
      %p169 = por %p167, %p168
      %p170 = scmp.ne.s32.totalorder %s158, %s159
      %p171 = scmp.eq.s32.totalorder %s30, 1
      %p172 = por %p170, %p171
      %p174 = scmp.ne.s32.totalorder %s159, %s173
      %p175 = scmp.eq.s32.totalorder %s30, 0
      %p176 = por %p174, %p175
      %s178 = sadd.s32 %s177, 1
      %p181 = scmp.eq.s32.totalorder %s24, 1
      %p182 = scmp.ne.s32.totalorder %s177, %s179
      %p183 = scmp.eq.s32.totalorder %s24, 0
      %p184 = por %p182, %p183
      %p185 = scmp.ne.s32.totalorder %s177, %s179
      %p186 = scmp.eq.s32.totalorder %s29, 1
      %p187 = por %p185, %p186
      %p188 = scmp.ne.s32.totalorder %s179, %s180
      %p189 = scmp.eq.s32.totalorder %s29, 0
      %p190 = por %p188, %p189
      %p191 = scmp.ne.s32.totalorder %s179, %s180
      %p192 = scmp.eq.s32.totalorder %s30, 1
      %p193 = por %p191, %p192
      %p195 = scmp.ne.s32.totalorder %s180, %s194
      %p196 = scmp.eq.s32.totalorder %s30, 0
      %p197 = por %p195, %p196
      %s199 = sadd.s32 %s198, 1
      %p202 = scmp.eq.s32.totalorder %s24, 1
      %p203 = scmp.ne.s32.totalorder %s198, %s200
      %p204 = scmp.eq.s32.totalorder %s24, 0
      %p205 = por %p203, %p204
      %p206 = scmp.ne.s32.totalorder %s198, %s200
      %p207 = scmp.eq.s32.totalorder %s29, 1
      %p208 = por %p206, %p207
      %p209 = scmp.ne.s32.totalorder %s200, %s201
      %p210 = scmp.eq.s32.totalorder %s29, 0
      %p211 = por %p209, %p210
      %p212 = scmp.ne.s32.totalorder %s200, %s201
      %p213 = scmp.eq.s32.totalorder %s30, 1
      %p214 = por %p212, %p213
      %p216 = scmp.ne.s32.totalorder %s201, %s215
      %p217 = scmp.eq.s32.totalorder %s30, 0
      %p218 = por %p216, %p217
      %s219 = sadd.s32 %s31, %s32
      %s220 = sadd.s32 %s43, %s39
      %s221 = ssub.s32 %s219, %s220
      %p222 = scmp.eq.s32.totalorder %s221, 0
      %s224 = sadd.s32 %s223, 1
      %s225 = scalar_select %p222, %s223, %s224
      %p228 = pneg %p222
      %p229 = scmp.eq.s32.totalorder %s24, 1
      %p230 = por %p228, %p229
      %p231 = scmp.ne.s32.totalorder %s223, %s226
      %p232 = scmp.eq.s32.totalorder %s24, 0
      %p233 = por %p231, %p232
      %p234 = scmp.ne.s32.totalorder %s223, %s226
      %p235 = scmp.eq.s32.totalorder %s29, 1
      %p236 = por %p234, %p235
      %p237 = scmp.ne.s32.totalorder %s226, %s227
      %p238 = scmp.eq.s32.totalorder %s29, 0
      %p239 = por %p237, %p238
      %p240 = scmp.ne.s32.totalorder %s226, %s227
      %p241 = scmp.eq.s32.totalorder %s30, 1
      %p242 = por %p240, %p241
      %p244 = scmp.ne.s32.totalorder %s227, %s243
      %p245 = scmp.eq.s32.totalorder %s30, 0
      %p246 = por %p244, %p245
      %p247 = scmp.le.s32.totalorder 1, %s24
      %p248 = scmp.lt.s32.totalorder %s24, 3
      %p249 = pnand %p247, %p248
      %p250 = pneg %p249
      // Predicated region
      $region9: #{tpu_custom_call.1} parent=5 // pred_check
        _
      $region10: #{tpu_custom_call.1} parent=5 // pred_check_branch
        %252 = sbr.rel (%p249) target = $region12
      $region11: #{tpu_custom_call.1} parent=5 // pred_region
        %s253 = ssub.s32 %s24, 1
        // Predicated region
        $region13: #{tpu_custom_call.1} parent=11 // pred_check
          %p254 = pneg %p85
        $region14: #{tpu_custom_call.1} parent=11 // pred_check_branch
          %256 = sbr.rel (%p254) target = $region16
        $region15: #{tpu_custom_call.1} parent=11 // pred_region
          %s258 = ssub.s32 32, 32
          %259 = vsyncadd [#allocation6], %s258
          %s261 = sshll.u32 [#allocation5], 4
          %s262 = int_to_ptr.vmem [resolvable:$true] %s261
          %264 = dma.hbm_to_vmem [thread:$0]  %s1, 32, %s262, [#allocation6]
        $region16: #{tpu_custom_call.1} parent=11 // pred_fallthru
          _
        // Predicated region
        $region17: #{tpu_custom_call.1} parent=11 // pred_check
          %p265 = pneg %p106
        $region18: #{tpu_custom_call.1} parent=11 // pred_check_branch
          %267 = sbr.rel (%p265) target = $region20
        $region19: #{tpu_custom_call.1} parent=11 // pred_region
          %s269 = ssub.s32 1024, 1024
          %270 = vsyncadd [#allocation6], %s269
          %s271 = sshll.u32 [#allocation7], 4
          %s272 = int_to_ptr.vmem [resolvable:$true] %s271
          %277 = dma.hbm_to_vmem [thread:$0]  %s2, 1024, %s272, [#allocation6], 64, 64, 4
        $region20: #{tpu_custom_call.1} parent=11 // pred_fallthru
          _
        // Predicated region
        $region21: #{tpu_custom_call.1} parent=11 // pred_check
          %p278 = pneg %p127
        $region22: #{tpu_custom_call.1} parent=11 // pred_check_branch
          %280 = sbr.rel (%p278) target = $region24
        $region23: #{tpu_custom_call.1} parent=11 // pred_region
          %s282 = ssub.s32 16, 16
          %283 = vsyncadd [#allocation9], %s282
          %s285 = sshll.u32 [#allocation8], 4
          %s286 = int_to_ptr.vmem [resolvable:$true] %s285
          %288 = dma.hbm_to_vmem [thread:$0]  %s3, 16, %s286, [#allocation9]
        $region24: #{tpu_custom_call.1} parent=11 // pred_fallthru
          _
        // Predicated region
        $region25: #{tpu_custom_call.1} parent=11 // pred_check
          %p289 = pneg %p148
        $region26: #{tpu_custom_call.1} parent=11 // pred_check_branch
          %291 = sbr.rel (%p289) target = $region28
        $region27: #{tpu_custom_call.1} parent=11 // pred_region
          %s293 = ssub.s32 1024, 1024
          %294 = vsyncadd [#allocation9], %s293
          %s295 = sshll.u32 [#allocation10], 4
          %s296 = int_to_ptr.vmem [resolvable:$true] %s295
          %301 = dma.hbm_to_vmem [thread:$0]  %s4, 1024, %s296, [#allocation9], 64, 64, 4
        $region28: #{tpu_custom_call.1} parent=11 // pred_fallthru
          _
        // Predicated region
        $region29: #{tpu_custom_call.1} parent=11 // pred_check
          %p302 = pneg %p169
        $region30: #{tpu_custom_call.1} parent=11 // pred_check_branch
          %304 = sbr.rel (%p302) target = $region32
        $region31: #{tpu_custom_call.1} parent=11 // pred_region
          %s306 = ssub.s32 16, 16
          %307 = vsyncadd [#allocation12], %s306
          %s309 = sshll.u32 [#allocation11], 4
          %s310 = int_to_ptr.vmem [resolvable:$true] %s309
          %312 = dma.hbm_to_vmem [thread:$0]  %s5, 16, %s310, [#allocation12]
        $region32: #{tpu_custom_call.1} parent=11 // pred_fallthru
          _
        // Predicated region
        $region33: #{tpu_custom_call.1} parent=11 // pred_check
          %p313 = pneg %p190
        $region34: #{tpu_custom_call.1} parent=11 // pred_check_branch
          %315 = sbr.rel (%p313) target = $region36
        $region35: #{tpu_custom_call.1} parent=11 // pred_region
          %s317 = ssub.s32 1024, 1024
          %318 = vsyncadd [#allocation12], %s317
          %s319 = sshll.u32 [#allocation13], 4
          %s320 = int_to_ptr.vmem [resolvable:$true] %s319
          %325 = dma.hbm_to_vmem [thread:$0]  %s6, 1024, %s320, [#allocation12], 64, 64, 4
        $region36: #{tpu_custom_call.1} parent=11 // pred_fallthru
          _
        // Predicated region
        $region37: #{tpu_custom_call.1} parent=11 // pred_check
          %p326 = pneg %p211
        $region38: #{tpu_custom_call.1} parent=11 // pred_check_branch
          %328 = sbr.rel (%p326) target = $region40
        $region39: #{tpu_custom_call.1} parent=11 // pred_region
          %s330 = ssub.s32 16, 16
          %331 = vsyncadd [#allocation15], %s330
          %s333 = sshll.u32 [#allocation14], 4
          %s334 = int_to_ptr.vmem [resolvable:$true] %s333
          %336 = dma.hbm_to_vmem [thread:$0]  %s7, 16, %s334, [#allocation15]
        $region40: #{tpu_custom_call.1} parent=11 // pred_fallthru
          _
      $region12: #{tpu_custom_call.1} parent=5 // pred_fallthru
        _
      %p337 = scmp.lt.s32.totalorder %s24, 2
      // Predicated region
      $region41: #{tpu_custom_call.1} parent=5 // pred_check
        %p338 = pneg %p337
      $region42: #{tpu_custom_call.1} parent=5 // pred_check_branch
        %340 = sbr.rel (%p338) target = $region44
      $region43: #{tpu_custom_call.1} parent=5 // pred_region
        // Predicated region
        $region45: #{tpu_custom_call.1} parent=43 // pred_check
          %p341 = pneg %p58
        $region46: #{tpu_custom_call.1} parent=43 // pred_check_branch
          %343 = sbr.rel (%p341) target = $region48
        $region47: #{tpu_custom_call.1} parent=43 // pred_region
          %s344 = sand.u32 %s48, 1
          %s345 = scalar_lea.sflag [#allocation3], %s344
          %s346 = sand.u32 %s48, 1
          %s347 = smul.addr %s346, 288
          %s348 = scalar_lea.vmem [#allocation2], %s347
          %s349 = sadd.s32 %s31, %s32
          %s350 = smul.u32 72, %s349
          %s352 = ssub.s32 4608, 4608
          %353 = vsyncadd %s345, %s352
          %s354 = smul.addr %s350, 64
          %s355 = scalar_lea.hbm %s0, %s354
          %s356 = sshll.u32 %s348, 4
          %s357 = int_to_ptr.vmem [resolvable:$true] %s356
          %362 = dma.hbm_to_vmem [thread:$0]  %s355, 4608, %s357, %s345, 64, 64, 4
        $region48: #{tpu_custom_call.1} parent=43 // pred_fallthru
          _
      $region44: #{tpu_custom_call.1} parent=5 // pred_fallthru
        _
      %p363 = scmp.le.s32.totalorder 1, %s24
      %p364 = scmp.lt.s32.totalorder %s24, 3
      %p365 = pnand %p363, %p364
      %p366 = pneg %p365
      // Predicated region
      $region49: #{tpu_custom_call.1} parent=5 // pred_check
        _
      $region50: #{tpu_custom_call.1} parent=5 // pred_check_branch
        %368 = sbr.rel (%p365) target = $region52
      $region51: #{tpu_custom_call.1} parent=5 // pred_region
        %s369 = ssub.s32 %s24, 1
        %s370 = sand.u32 %s51, 1
        %s371 = scalar_lea.sflag [#allocation3], %s370
        %s372 = sand.u32 %s51, 1
        %s373 = smul.addr %s372, 288
        %s374 = scalar_lea.vmem [#allocation2], %s373
        // Predicated region
        $region53: #{tpu_custom_call.1} parent=51 // pred_check
          %p375 = pneg %p64
        $region54: #{tpu_custom_call.1} parent=51 // pred_check_branch
          %377 = sbr.rel (%p375) target = $region56
        $region55: #{tpu_custom_call.1} parent=51 // pred_region
          %378 = dma.done %s371, 4608
        $region56: #{tpu_custom_call.1} parent=51 // pred_fallthru
          _
        // Predicated region
        $region57: #{tpu_custom_call.1} parent=51 // pred_check
          %p379 = pneg %p85
        $region58: #{tpu_custom_call.1} parent=51 // pred_check_branch
          %381 = sbr.rel (%p379) target = $region60
        $region59: #{tpu_custom_call.1} parent=51 // pred_region
          %382 = dma.done [#allocation6], 32
        $region60: #{tpu_custom_call.1} parent=51 // pred_fallthru
          _
        // Predicated region
        $region61: #{tpu_custom_call.1} parent=51 // pred_check
          %p383 = pneg %p106
        $region62: #{tpu_custom_call.1} parent=51 // pred_check_branch
          %385 = sbr.rel (%p383) target = $region64
        $region63: #{tpu_custom_call.1} parent=51 // pred_region
          %386 = dma.done [#allocation6], 1024
        $region64: #{tpu_custom_call.1} parent=51 // pred_fallthru
          _
        // Predicated region
        $region65: #{tpu_custom_call.1} parent=51 // pred_check
          %p387 = pneg %p127
        $region66: #{tpu_custom_call.1} parent=51 // pred_check_branch
          %389 = sbr.rel (%p387) target = $region68
        $region67: #{tpu_custom_call.1} parent=51 // pred_region
          %390 = dma.done [#allocation9], 16
        $region68: #{tpu_custom_call.1} parent=51 // pred_fallthru
          _
        // Predicated region
        $region69: #{tpu_custom_call.1} parent=51 // pred_check
          %p391 = pneg %p148
        $region70: #{tpu_custom_call.1} parent=51 // pred_check_branch
          %393 = sbr.rel (%p391) target = $region72
        $region71: #{tpu_custom_call.1} parent=51 // pred_region
          %394 = dma.done [#allocation9], 1024
        $region72: #{tpu_custom_call.1} parent=51 // pred_fallthru
          _
        // Predicated region
        $region73: #{tpu_custom_call.1} parent=51 // pred_check
          %p395 = pneg %p169
        $region74: #{tpu_custom_call.1} parent=51 // pred_check_branch
          %397 = sbr.rel (%p395) target = $region76
        $region75: #{tpu_custom_call.1} parent=51 // pred_region
          %398 = dma.done [#allocation12], 16
        $region76: #{tpu_custom_call.1} parent=51 // pred_fallthru
          _
        // Predicated region
        $region77: #{tpu_custom_call.1} parent=51 // pred_check
          %p399 = pneg %p190
        $region78: #{tpu_custom_call.1} parent=51 // pred_check_branch
          %401 = sbr.rel (%p399) target = $region80
        $region79: #{tpu_custom_call.1} parent=51 // pred_region
          %402 = dma.done [#allocation12], 1024
        $region80: #{tpu_custom_call.1} parent=51 // pred_fallthru
          _
        // Predicated region
        $region81: #{tpu_custom_call.1} parent=51 // pred_check
          %p403 = pneg %p211
        $region82: #{tpu_custom_call.1} parent=51 // pred_check_branch
          %405 = sbr.rel (%p403) target = $region84
        $region83: #{tpu_custom_call.1} parent=51 // pred_region
          %406 = dma.done [#allocation15], 16
        $region84: #{tpu_custom_call.1} parent=51 // pred_fallthru
          _
        %s407 = sand.u32 %s51, 1
        %s408 = scalar_lea.sflag [#allocation3], %s407
        %s409 = sand.u32 %s51, 1
        %s410 = smul.addr %s409, 288
        %s411 = scalar_lea.vmem [#allocation2], %s410
        %p412 = pneg %p64
        %p413 = pneg %p61
        %p414 = pneg %p85
        %p415 = pneg %p82
        %p416 = pneg %p106
        %p417 = pneg %p103
        %p418 = pneg %p127
        %p419 = pneg %p124
        %p420 = pneg %p148
        %p421 = pneg %p145
        %p422 = pneg %p169
        %p423 = pneg %p166
        %p424 = pneg %p190
        %p425 = pneg %p187
        %p426 = pneg %p211
        %p427 = pneg %p208
        %p428 = pneg %p239
        %p429 = pneg %p236
        %s430 = sand.u32 %s226, 1
        %s431 = scalar_lea.sflag [#allocation4], %s430
        %s432 = sand.u32 %s226, 1
        %s433 = smul.addr %s432, 288
        %s434 = scalar_lea.vmem [#allocation16], %s433
        %s435 = sadd.s32 %s33, %s34
        %s436 = smul.u32 72, %s435
        %s437 = sadd.s32 %s33, %s34
        %s438 = smul.u32 72, %s437
        %v440 = vld [vmem:[#allocation5] sm:$0x3]
        %v441 = vpack.c.bf16 %v440, %v440
        %v442 = vld [vmem:[#allocation7] sm:$0xf]
        %v443 = vld [vmem:[#allocation7 + $0x4] sm:$0xf]
        %v444 = vld [vmem:[#allocation7 + $0x8] sm:$0xf]
        %v445 = vld [vmem:[#allocation7 + $0xc] sm:$0xf]
        %v446 = vld [vmem:[#allocation7 + $0x10] sm:$0xf]
        %v447 = vld [vmem:[#allocation7 + $0x14] sm:$0xf]
        %v448 = vld [vmem:[#allocation7 + $0x18] sm:$0xf]
        %v449 = vld [vmem:[#allocation7 + $0x1c] sm:$0xf]
        %v450 = vld [vmem:[#allocation7 + $0x20] sm:$0xf]
        %v451 = vld [vmem:[#allocation7 + $0x24] sm:$0xf]
        %v452 = vld [vmem:[#allocation7 + $0x28] sm:$0xf]
        %v453 = vld [vmem:[#allocation7 + $0x2c] sm:$0xf]
        %v454 = vld [vmem:[#allocation7 + $0x30] sm:$0xf]
        %v455 = vld [vmem:[#allocation7 + $0x34] sm:$0xf]
        %v456 = vld [vmem:[#allocation7 + $0x38] sm:$0xf]
        %v457 = vld [vmem:[#allocation7 + $0x3c] sm:$0xf]
        %v458 = vld [vmem:[#allocation8] sm:$0x1]
        %v460 = vlaneseq
        %v461 = vshrl.u32 %v460, 7
        %v462 = vsub.s32 0, %v461
        %v463 = vrot.slane %v458, %v462
        %v481 = vunpack.c.l.b16 %v442
        %v482 = vunpack.c.l.b16 %v443
        %v483 = vunpack.c.l.b16 %v444
        %v484 = vunpack.c.l.b16 %v445
        %v485 = vunpack.c.l.b16 %v446
        %v486 = vunpack.c.l.b16 %v447
        %v487 = vunpack.c.l.b16 %v448
        %v488 = vunpack.c.l.b16 %v449
        %v489 = vunpack.c.l.b16 %v450
        %v490 = vunpack.c.l.b16 %v451
        %v491 = vunpack.c.l.b16 %v452
        %v492 = vunpack.c.l.b16 %v453
        %v493 = vunpack.c.l.b16 %v454
        %v494 = vunpack.c.l.b16 %v455
        %v495 = vunpack.c.l.b16 %v456
        %v496 = vunpack.c.l.b16 %v457
        %v497 = vpack.c.b16 %v482, %v481
        %v498 = vpack.c.b16 %v484, %v483
        %v499 = vpack.c.b16 %v486, %v485
        %v500 = vpack.c.b16 %v488, %v487
        %v501 = vpack.c.b16 %v490, %v489
        %v502 = vpack.c.b16 %v492, %v491
        %v503 = vpack.c.b16 %v494, %v493
        %v504 = vpack.c.b16 %v496, %v495
        %513 = vmatprep.subr.bf16.mxu0 0
        %514 = vmatpush1.bf16.msra.mxu0 %v497
        %515 = vmatprep.subr.bf16.mxu0 0
        %516 = vmatpush1.bf16.msra.mxu0 %v498
        %517 = vmatprep.subr.bf16.mxu0 0
        %518 = vmatpush1.bf16.msra.mxu0 %v499
        %519 = vmatprep.subr.bf16.mxu0 0
        %520 = vmatpush1.bf16.msra.mxu0 %v500
        %521 = vmatprep.subr.bf16.mxu0 0
        %522 = vmatpush1.bf16.msra.mxu0 %v501
        %523 = vmatprep.subr.bf16.mxu0 0
        %524 = vmatpush1.bf16.msra.mxu0 %v502
        %525 = vmatprep.subr.bf16.mxu0 0
        %526 = vmatpush1.bf16.msra.mxu0 %v503
        %527 = vmatprep.subr.bf16.mxu0 0
        %528 = vmatpush1.bf16.msra.mxu0 %v504
        %529 = vmatprep.subr.bf16.mxu0 0
        %530 = vmatpush1.bf16.msra.mxu0 0
        %531 = vmatprep.subr.bf16.mxu0 0
        %532 = vmatpush1.bf16.msra.mxu0 0
        %533 = vmatprep.subr.bf16.mxu0 0
        %534 = vmatpush1.bf16.msra.mxu0 0
        %535 = vmatprep.subr.bf16.mxu0 0
        %536 = vmatpush1.bf16.msra.mxu0 0
        %537 = vmatprep.subr.bf16.mxu0 0
        %538 = vmatpush1.bf16.msra.mxu0 0
        %539 = vmatprep.subr.bf16.mxu0 0
        %540 = vmatpush1.bf16.msra.mxu0 0
        %541 = vmatprep.subr.bf16.mxu0 0
        %542 = vmatpush1.bf16.msra.mxu0 0
        %543 = vmatprep.subr.bf16.mxu0 0
        %544 = vmatpush1.bf16.msra.mxu0 0
        %545 = vmatprep.mubr.bf16.mxu0 0
        %546 = vmatmul.mubr.bf16.gmra.mrb[0].mxu0 %v441
        %v547 = vpop.f32.mrb[0].mxu0
        %v548 = vadd.f32 %v463, %v547
        %v549 = vpop.f32.mrb[0].mxu0
        %v550 = vpop.f32.mrb[0].mxu0
        %v551 = vpop.f32.mrb[0].mxu0
        %552 = vdwg.mxu0
        %v553 = vxor.u32 %v548, 2147483648
        %v554 = vmul.f32 %v553, 1.442695
        %v555 = vpow.pop %v554
        %v556 = vadd.f32 %v555, 1.0
        %v557 = vrcp.pop %v556
        %v558 = vmul.f32 1.0, %v557
        %v559 = vmul.f32 %v548, %v558
        %v560 = vlaneseq
        %v561 = vshrl.u32 %v560, 7
        %v562 = vstv %s33
        %vm563 = vcmp.eq.s32.totalorder %v561, %v562
        %v564 = vsel %vm563, %v559, 0.0
        %vm565 = vcmask 1041408
        %v566 = vsel %vm565, %v564, 0.0
        %v567 = vrot.slane %v566, 4
        %v568 = vadd.f32 %v566, %v567
        %v569 = vrot.slane %v568, 2
        %v570 = vadd.f32 %v568, %v569
        %v571 = vrot.slane %v570, 1
        %v572 = vadd.f32 %v570, %v571
        %v573 = vld [vmem:[%s374] sm:$0xf]
        %v574 = vld [vmem:[%s374 + $0x4] sm:$0xf]
        %v575 = vld [vmem:[%s374 + $0x8] sm:$0xf]
        %v576 = vld [vmem:[%s374 + $0xc] sm:$0xf]
        %v577 = vld [vmem:[%s374 + $0x10] sm:$0xf]
        %v578 = vld [vmem:[%s374 + $0x14] sm:$0xf]
        %v579 = vld [vmem:[%s374 + $0x18] sm:$0xf]
        %v580 = vld [vmem:[%s374 + $0x1c] sm:$0xf]
        %v581 = vld [vmem:[%s374 + $0x20] sm:$0xf]
        %v582 = vld [vmem:[%s374 + $0x24] sm:$0xf]
        %v583 = vld [vmem:[%s374 + $0x28] sm:$0xf]
        %v584 = vld [vmem:[%s374 + $0x2c] sm:$0xf]
        %v585 = vld [vmem:[%s374 + $0x30] sm:$0xf]
        %v586 = vld [vmem:[%s374 + $0x34] sm:$0xf]
        %v587 = vld [vmem:[%s374 + $0x38] sm:$0xf]
        %v588 = vld [vmem:[%s374 + $0x3c] sm:$0xf]
        %v589 = vld [vmem:[%s374 + $0x40] sm:$0xf]
        %v590 = vld [vmem:[%s374 + $0x44] sm:$0xf]
        %v591 = vld [vmem:[%s374 + $0x48] sm:$0xf]
        %v592 = vld [vmem:[%s374 + $0x4c] sm:$0xf]
        %v593 = vld [vmem:[%s374 + $0x50] sm:$0xf]
        %v594 = vld [vmem:[%s374 + $0x54] sm:$0xf]
        %v595 = vld [vmem:[%s374 + $0x58] sm:$0xf]
        %v596 = vld [vmem:[%s374 + $0x5c] sm:$0xf]
        %v597 = vld [vmem:[%s374 + $0x60] sm:$0xf]
        %v598 = vld [vmem:[%s374 + $0x64] sm:$0xf]
        %v599 = vld [vmem:[%s374 + $0x68] sm:$0xf]
        %v600 = vld [vmem:[%s374 + $0x6c] sm:$0xf]
        %v601 = vld [vmem:[%s374 + $0x70] sm:$0xf]
        %v602 = vld [vmem:[%s374 + $0x74] sm:$0xf]
        %v603 = vld [vmem:[%s374 + $0x78] sm:$0xf]
        %v604 = vld [vmem:[%s374 + $0x7c] sm:$0xf]
        %v605 = vld [vmem:[%s374 + $0x80] sm:$0xf]
        %v606 = vld [vmem:[%s374 + $0x84] sm:$0xf]
        %v607 = vld [vmem:[%s374 + $0x88] sm:$0xf]
        %v608 = vld [vmem:[%s374 + $0x8c] sm:$0xf]
        %v609 = vld [vmem:[%s374 + $0x90] sm:$0xf]
        %v610 = vld [vmem:[%s374 + $0x94] sm:$0xf]
        %v611 = vld [vmem:[%s374 + $0x98] sm:$0xf]
        %v612 = vld [vmem:[%s374 + $0x9c] sm:$0xf]
        %v613 = vld [vmem:[%s374 + $0xa0] sm:$0xf]
        %v614 = vld [vmem:[%s374 + $0xa4] sm:$0xf]
        %v615 = vld [vmem:[%s374 + $0xa8] sm:$0xf]
        %v616 = vld [vmem:[%s374 + $0xac] sm:$0xf]
        %v617 = vld [vmem:[%s374 + $0xb0] sm:$0xf]
        %v618 = vld [vmem:[%s374 + $0xb4] sm:$0xf]
        %v619 = vld [vmem:[%s374 + $0xb8] sm:$0xf]
        %v620 = vld [vmem:[%s374 + $0xbc] sm:$0xf]
        %v621 = vld [vmem:[%s374 + $0xc0] sm:$0xf]
        %v622 = vld [vmem:[%s374 + $0xc4] sm:$0xf]
        %v623 = vld [vmem:[%s374 + $0xc8] sm:$0xf]
        %v624 = vld [vmem:[%s374 + $0xcc] sm:$0xf]
        %v625 = vld [vmem:[%s374 + $0xd0] sm:$0xf]
        %v626 = vld [vmem:[%s374 + $0xd4] sm:$0xf]
        %v627 = vld [vmem:[%s374 + $0xd8] sm:$0xf]
        %v628 = vld [vmem:[%s374 + $0xdc] sm:$0xf]
        %v629 = vld [vmem:[%s374 + $0xe0] sm:$0xf]
        %v630 = vld [vmem:[%s374 + $0xe4] sm:$0xf]
        %v631 = vld [vmem:[%s374 + $0xe8] sm:$0xf]
        %v632 = vld [vmem:[%s374 + $0xec] sm:$0xf]
        %v633 = vld [vmem:[%s374 + $0xf0] sm:$0xf]
        %v634 = vld [vmem:[%s374 + $0xf4] sm:$0xf]
        %v635 = vld [vmem:[%s374 + $0xf8] sm:$0xf]
        %v636 = vld [vmem:[%s374 + $0xfc] sm:$0xf]
        %v637 = vld [vmem:[%s374 + $0x100] sm:$0xf]
        %v638 = vld [vmem:[%s374 + $0x104] sm:$0xf]
        %v639 = vld [vmem:[%s374 + $0x108] sm:$0xf]
        %v640 = vld [vmem:[%s374 + $0x10c] sm:$0xf]
        %v641 = vld [vmem:[%s374 + $0x110] sm:$0xf]
        %v642 = vld [vmem:[%s374 + $0x114] sm:$0xf]
        %v643 = vld [vmem:[%s374 + $0x118] sm:$0xf]
        %v644 = vld [vmem:[%s374 + $0x11c] sm:$0xf]
        %v645 = vld [vmem:[#allocation10] sm:$0xf]
        %v646 = vld [vmem:[#allocation10 + $0x4] sm:$0xf]
        %v647 = vld [vmem:[#allocation10 + $0x8] sm:$0xf]
        %v648 = vld [vmem:[#allocation10 + $0xc] sm:$0xf]
        %v649 = vld [vmem:[#allocation10 + $0x10] sm:$0xf]
        %v650 = vld [vmem:[#allocation10 + $0x14] sm:$0xf]
        %v651 = vld [vmem:[#allocation10 + $0x18] sm:$0xf]
        %v652 = vld [vmem:[#allocation10 + $0x1c] sm:$0xf]
        %v653 = vld [vmem:[#allocation10 + $0x20] sm:$0xf]
        %v654 = vld [vmem:[#allocation10 + $0x24] sm:$0xf]
        %v655 = vld [vmem:[#allocation10 + $0x28] sm:$0xf]
        %v656 = vld [vmem:[#allocation10 + $0x2c] sm:$0xf]
        %v657 = vld [vmem:[#allocation10 + $0x30] sm:$0xf]
        %v658 = vld [vmem:[#allocation10 + $0x34] sm:$0xf]
        %v659 = vld [vmem:[#allocation10 + $0x38] sm:$0xf]
        %v660 = vld [vmem:[#allocation10 + $0x3c] sm:$0xf]
        %v661 = vld [vmem:[#allocation11] sm:$0x1]
        %v663 = vlaneseq
        %v664 = vshrl.u32 %v663, 7
        %v665 = vsub.s32 0, %v664
        %v666 = vrot.slane %v661, %v665
        %v740 = vunpack.c.l.b16 %v573
        %v741 = vunpack.c.l.b16 %v574
        %v742 = vunpack.c.l.b16 %v575
        %v743 = vunpack.c.l.b16 %v576
        %v744 = vunpack.c.l.b16 %v577
        %v745 = vunpack.c.l.b16 %v578
        %v746 = vunpack.c.l.b16 %v579
        %v747 = vunpack.c.l.b16 %v580
        %v748 = vunpack.c.l.b16 %v581
        %v749 = vunpack.c.l.b16 %v582
        %v750 = vunpack.c.l.b16 %v583
        %v751 = vunpack.c.l.b16 %v584
        %v752 = vunpack.c.l.b16 %v585
        %v753 = vunpack.c.l.b16 %v586
        %v754 = vunpack.c.l.b16 %v587
        %v755 = vunpack.c.l.b16 %v588
        %v756 = vunpack.c.l.b16 %v589
        %v757 = vunpack.c.l.b16 %v590
        %v758 = vunpack.c.l.b16 %v591
        %v759 = vunpack.c.l.b16 %v592
        %v760 = vunpack.c.l.b16 %v593
        %v761 = vunpack.c.l.b16 %v594
        %v762 = vunpack.c.l.b16 %v595
        %v763 = vunpack.c.l.b16 %v596
        %v764 = vunpack.c.l.b16 %v597
        %v765 = vunpack.c.l.b16 %v598
        %v766 = vunpack.c.l.b16 %v599
        %v767 = vunpack.c.l.b16 %v600
        %v768 = vunpack.c.l.b16 %v601
        %v769 = vunpack.c.l.b16 %v602
        %v770 = vunpack.c.l.b16 %v603
        %v771 = vunpack.c.l.b16 %v604
        %v772 = vunpack.c.l.b16 %v605
        %v773 = vunpack.c.l.b16 %v606
        %v774 = vunpack.c.l.b16 %v607
        %v775 = vunpack.c.l.b16 %v608
        %v776 = vunpack.c.l.b16 %v609
        %v777 = vunpack.c.l.b16 %v610
        %v778 = vunpack.c.l.b16 %v611
        %v779 = vunpack.c.l.b16 %v612
        %v780 = vunpack.c.l.b16 %v613
        %v781 = vunpack.c.l.b16 %v614
        %v782 = vunpack.c.l.b16 %v615
        %v783 = vunpack.c.l.b16 %v616
        %v784 = vunpack.c.l.b16 %v617
        %v785 = vunpack.c.l.b16 %v618
        %v786 = vunpack.c.l.b16 %v619
        %v787 = vunpack.c.l.b16 %v620
        %v788 = vunpack.c.l.b16 %v621
        %v789 = vunpack.c.l.b16 %v622
        %v790 = vunpack.c.l.b16 %v623
        %v791 = vunpack.c.l.b16 %v624
        %v792 = vunpack.c.l.b16 %v625
        %v793 = vunpack.c.l.b16 %v626
        %v794 = vunpack.c.l.b16 %v627
        %v795 = vunpack.c.l.b16 %v628
        %v796 = vunpack.c.l.b16 %v629
        %v797 = vunpack.c.l.b16 %v630
        %v798 = vunpack.c.l.b16 %v631
        %v799 = vunpack.c.l.b16 %v632
        %v800 = vunpack.c.l.b16 %v633
        %v801 = vunpack.c.l.b16 %v634
        %v802 = vunpack.c.l.b16 %v635
        %v803 = vunpack.c.l.b16 %v636
        %v804 = vunpack.c.l.b16 %v637
        %v805 = vunpack.c.l.b16 %v638
        %v806 = vunpack.c.l.b16 %v639
        %v807 = vunpack.c.l.b16 %v640
        %v808 = vunpack.c.l.b16 %v641
        %v809 = vunpack.c.l.b16 %v642
        %v810 = vunpack.c.l.b16 %v643
        %v811 = vunpack.c.l.b16 %v644
        %v812 = vpack.c.b16 %v741, %v740
        %v813 = vpack.c.b16 %v743, %v742
        %v814 = vpack.c.b16 %v745, %v744
        %v815 = vpack.c.b16 %v747, %v746
        %v816 = vpack.c.b16 %v749, %v748
        %v817 = vpack.c.b16 %v751, %v750
        %v818 = vpack.c.b16 %v753, %v752
        %v819 = vpack.c.b16 %v755, %v754
        %v820 = vpack.c.b16 %v757, %v756
        %v821 = vpack.c.b16 %v759, %v758
        %v822 = vpack.c.b16 %v761, %v760
        %v823 = vpack.c.b16 %v763, %v762
        %v824 = vpack.c.b16 %v765, %v764
        %v825 = vpack.c.b16 %v767, %v766
        %v826 = vpack.c.b16 %v769, %v768
        %v827 = vpack.c.b16 %v771, %v770
        %v828 = vpack.c.b16 %v773, %v772
        %v829 = vpack.c.b16 %v775, %v774
        %v830 = vpack.c.b16 %v777, %v776
        %v831 = vpack.c.b16 %v779, %v778
        %v832 = vpack.c.b16 %v781, %v780
        %v833 = vpack.c.b16 %v783, %v782
        %v834 = vpack.c.b16 %v785, %v784
        %v835 = vpack.c.b16 %v787, %v786
        %v836 = vpack.c.b16 %v789, %v788
        %v837 = vpack.c.b16 %v791, %v790
        %v838 = vpack.c.b16 %v793, %v792
        %v839 = vpack.c.b16 %v795, %v794
        %v840 = vpack.c.b16 %v797, %v796
        %v841 = vpack.c.b16 %v799, %v798
        %v842 = vpack.c.b16 %v801, %v800
        %v843 = vpack.c.b16 %v803, %v802
        %v844 = vpack.c.b16 %v805, %v804
        %v845 = vpack.c.b16 %v807, %v806
        %v846 = vpack.c.b16 %v809, %v808
        %v847 = vpack.c.b16 %v811, %v810
        %v900 = vunpack.c.l.b16 %v645
        %v901 = vunpack.c.l.b16 %v646
        %v902 = vunpack.c.l.b16 %v647
        %v903 = vunpack.c.l.b16 %v648
        %v904 = vunpack.c.l.b16 %v649
        %v905 = vunpack.c.l.b16 %v650
        %v906 = vunpack.c.l.b16 %v651
        %v907 = vunpack.c.l.b16 %v652
        %v908 = vunpack.c.l.b16 %v653
        %v909 = vunpack.c.l.b16 %v654
        %v910 = vunpack.c.l.b16 %v655
        %v911 = vunpack.c.l.b16 %v656
        %v912 = vunpack.c.l.b16 %v657
        %v913 = vunpack.c.l.b16 %v658
        %v914 = vunpack.c.l.b16 %v659
        %v915 = vunpack.c.l.b16 %v660
        %v916 = vpack.c.b16 %v901, %v900
        %v917 = vpack.c.b16 %v903, %v902
        %v918 = vpack.c.b16 %v905, %v904
        %v919 = vpack.c.b16 %v907, %v906
        %v920 = vpack.c.b16 %v909, %v908
        %v921 = vpack.c.b16 %v911, %v910
        %v922 = vpack.c.b16 %v913, %v912
        %v923 = vpack.c.b16 %v915, %v914
        %932 = vmatprep.subr.bf16.mxu0 0
        %933 = vmatpush1.bf16.msra.mxu0 %v916
        %934 = vmatprep.subr.bf16.mxu0 0
        %935 = vmatpush1.bf16.msra.mxu0 %v917
        %936 = vmatprep.subr.bf16.mxu0 0
        %937 = vmatpush1.bf16.msra.mxu0 %v918
        %938 = vmatprep.subr.bf16.mxu0 0
        %939 = vmatpush1.bf16.msra.mxu0 %v919
        %940 = vmatprep.subr.bf16.mxu0 0
        %941 = vmatpush1.bf16.msra.mxu0 %v920
        %942 = vmatprep.subr.bf16.mxu0 0
        %943 = vmatpush1.bf16.msra.mxu0 %v921
        %944 = vmatprep.subr.bf16.mxu0 0
        %945 = vmatpush1.bf16.msra.mxu0 %v922
        %946 = vmatprep.subr.bf16.mxu0 0
        %947 = vmatpush1.bf16.msra.mxu0 %v923
        %948 = vmatprep.subr.bf16.mxu0 0
        %949 = vmatpush1.bf16.msra.mxu0 0
        %950 = vmatprep.subr.bf16.mxu0 0
        %951 = vmatpush1.bf16.msra.mxu0 0
        %952 = vmatprep.subr.bf16.mxu0 0
        %953 = vmatpush1.bf16.msra.mxu0 0
        %954 = vmatprep.subr.bf16.mxu0 0
        %955 = vmatpush1.bf16.msra.mxu0 0
        %956 = vmatprep.subr.bf16.mxu0 0
        %957 = vmatpush1.bf16.msra.mxu0 0
        %958 = vmatprep.subr.bf16.mxu0 0
        %959 = vmatpush1.bf16.msra.mxu0 0
        %960 = vmatprep.subr.bf16.mxu0 0
        %961 = vmatpush1.bf16.msra.mxu0 0
        %962 = vmatprep.subr.bf16.mxu0 0
        %963 = vmatpush1.bf16.msra.mxu0 0
        %964 = vmatprep.mubr.bf16.mxu0 0
        %965 = vmatmul.mubr.bf16.gmra.mrb[0].mxu0 %v812
        %v966 = vpop.f32.mrb[0].mxu0
        %v967 = vadd.f32 %v666, %v966
        %v968 = vpop.f32.mrb[0].mxu0
        %v969 = vpop.f32.mrb[0].mxu0
        %v970 = vadd.f32 %v666, %v969
        %v971 = vpop.f32.mrb[0].mxu0
        %972 = vmatprep.mubr.bf16.mxu0 0
        %973 = vmatmul.mubr.bf16.gmra.mrb[0].mxu0 %v813
        %v974 = vpop.f32.mrb[0].mxu0
        %v975 = vadd.f32 %v666, %v974
        %v976 = vpop.f32.mrb[0].mxu0
        %v977 = vpop.f32.mrb[0].mxu0
        %v978 = vadd.f32 %v666, %v977
        %v979 = vpop.f32.mrb[0].mxu0
        %980 = vmatprep.mubr.bf16.mxu0 0
        %981 = vmatmul.mubr.bf16.gmra.mrb[0].mxu0 %v814
        %v982 = vpop.f32.mrb[0].mxu0
        %v983 = vadd.f32 %v666, %v982
        %v984 = vpop.f32.mrb[0].mxu0
        %v985 = vpop.f32.mrb[0].mxu0
        %v986 = vadd.f32 %v666, %v985
        %v987 = vpop.f32.mrb[0].mxu0
        %988 = vmatprep.mubr.bf16.mxu0 0
        %989 = vmatmul.mubr.bf16.gmra.mrb[0].mxu0 %v815
        %v990 = vpop.f32.mrb[0].mxu0
        %v991 = vadd.f32 %v666, %v990
        %v992 = vpop.f32.mrb[0].mxu0
        %v993 = vpop.f32.mrb[0].mxu0
        %v994 = vadd.f32 %v666, %v993
        %v995 = vpop.f32.mrb[0].mxu0
        %996 = vmatprep.mubr.bf16.mxu0 0
        %997 = vmatmul.mubr.bf16.gmra.mrb[0].mxu0 %v816
        %v998 = vpop.f32.mrb[0].mxu0
        %v999 = vadd.f32 %v666, %v998
        %v1000 = vpop.f32.mrb[0].mxu0
        %v1001 = vpop.f32.mrb[0].mxu0
        %v1002 = vadd.f32 %v666, %v1001
        %v1003 = vpop.f32.mrb[0].mxu0
        %1004 = vmatprep.mubr.bf16.mxu0 0
        %1005 = vmatmul.mubr.bf16.gmra.mrb[0].mxu0 %v817
        %v1006 = vpop.f32.mrb[0].mxu0
        %v1007 = vadd.f32 %v666, %v1006
        %v1008 = vpop.f32.mrb[0].mxu0
        %v1009 = vpop.f32.mrb[0].mxu0
        %v1010 = vadd.f32 %v666, %v1009
        %v1011 = vpop.f32.mrb[0].mxu0
        %1012 = vmatprep.mubr.bf16.mxu0 0
        %1013 = vmatmul.mubr.bf16.gmra.mrb[0].mxu0 %v818
        %v1014 = vpop.f32.mrb[0].mxu0
        %v1015 = vadd.f32 %v666, %v1014
        %v1016 = vpop.f32.mrb[0].mxu0
        %v1017 = vpop.f32.mrb[0].mxu0
        %v1018 = vadd.f32 %v666, %v1017
        %v1019 = vpop.f32.mrb[0].mxu0
        %1020 = vmatprep.mubr.bf16.mxu0 0
        %1021 = vmatmul.mubr.bf16.gmra.mrb[0].mxu0 %v819
        %v1022 = vpop.f32.mrb[0].mxu0
        %v1023 = vadd.f32 %v666, %v1022
        %v1024 = vpop.f32.mrb[0].mxu0
        %v1025 = vpop.f32.mrb[0].mxu0
        %v1026 = vadd.f32 %v666, %v1025
        %v1027 = vpop.f32.mrb[0].mxu0
        %1028 = vmatprep.mubr.bf16.mxu0 0
        %1029 = vmatmul.mubr.bf16.gmra.mrb[0].mxu0 %v820
        %v1030 = vpop.f32.mrb[0].mxu0
        %v1031 = vadd.f32 %v666, %v1030
        %v1032 = vpop.f32.mrb[0].mxu0
        %v1033 = vpop.f32.mrb[0].mxu0
        %v1034 = vadd.f32 %v666, %v1033
        %v1035 = vpop.f32.mrb[0].mxu0
        %1036 = vmatprep.mubr.bf16.mxu0 0
        %1037 = vmatmul.mubr.bf16.gmra.mrb[0].mxu0 %v821
        %v1038 = vpop.f32.mrb[0].mxu0
        %v1039 = vadd.f32 %v666, %v1038
        %v1040 = vpop.f32.mrb[0].mxu0
        %v1041 = vpop.f32.mrb[0].mxu0
        %v1042 = vadd.f32 %v666, %v1041
        %v1043 = vpop.f32.mrb[0].mxu0
        %1044 = vmatprep.mubr.bf16.mxu0 0
        %1045 = vmatmul.mubr.bf16.gmra.mrb[0].mxu0 %v822
        %v1046 = vpop.f32.mrb[0].mxu0
        %v1047 = vadd.f32 %v666, %v1046
        %v1048 = vpop.f32.mrb[0].mxu0
        %v1049 = vpop.f32.mrb[0].mxu0
        %v1050 = vadd.f32 %v666, %v1049
        %v1051 = vpop.f32.mrb[0].mxu0
        %1052 = vmatprep.mubr.bf16.mxu0 0
        %1053 = vmatmul.mubr.bf16.gmra.mrb[0].mxu0 %v823
        %v1054 = vpop.f32.mrb[0].mxu0
        %v1055 = vadd.f32 %v666, %v1054
        %v1056 = vpop.f32.mrb[0].mxu0
        %v1057 = vpop.f32.mrb[0].mxu0
        %v1058 = vadd.f32 %v666, %v1057
        %v1059 = vpop.f32.mrb[0].mxu0
        %1060 = vmatprep.mubr.bf16.mxu0 0
        %1061 = vmatmul.mubr.bf16.gmra.mrb[0].mxu0 %v824
        %v1062 = vpop.f32.mrb[0].mxu0
        %v1063 = vadd.f32 %v666, %v1062
        %v1064 = vpop.f32.mrb[0].mxu0
        %v1065 = vpop.f32.mrb[0].mxu0
        %v1066 = vadd.f32 %v666, %v1065
        %v1067 = vpop.f32.mrb[0].mxu0
        %1068 = vmatprep.mubr.bf16.mxu0 0
        %1069 = vmatmul.mubr.bf16.gmra.mrb[0].mxu0 %v825
        %v1070 = vpop.f32.mrb[0].mxu0
        %v1071 = vadd.f32 %v666, %v1070
        %v1072 = vpop.f32.mrb[0].mxu0
        %v1073 = vpop.f32.mrb[0].mxu0
        %v1074 = vadd.f32 %v666, %v1073
        %v1075 = vpop.f32.mrb[0].mxu0
        %1076 = vmatprep.mubr.bf16.mxu0 0
        %1077 = vmatmul.mubr.bf16.gmra.mrb[0].mxu0 %v826
        %v1078 = vpop.f32.mrb[0].mxu0
        %v1079 = vadd.f32 %v666, %v1078
        %v1080 = vpop.f32.mrb[0].mxu0
        %v1081 = vpop.f32.mrb[0].mxu0
        %v1082 = vadd.f32 %v666, %v1081
        %v1083 = vpop.f32.mrb[0].mxu0
        %1084 = vmatprep.mubr.bf16.mxu0 0
        %1085 = vmatmul.mubr.bf16.gmra.mrb[0].mxu0 %v827
        %v1086 = vpop.f32.mrb[0].mxu0
        %v1087 = vadd.f32 %v666, %v1086
        %v1088 = vpop.f32.mrb[0].mxu0
        %v1089 = vpop.f32.mrb[0].mxu0
        %v1090 = vadd.f32 %v666, %v1089
        %v1091 = vpop.f32.mrb[0].mxu0
        %1092 = vmatprep.mubr.bf16.mxu0 0
        %1093 = vmatmul.mubr.bf16.gmra.mrb[0].mxu0 %v828
        %v1094 = vpop.f32.mrb[0].mxu0
        %v1095 = vadd.f32 %v666, %v1094
        %v1096 = vpop.f32.mrb[0].mxu0
        %v1097 = vpop.f32.mrb[0].mxu0
        %v1098 = vadd.f32 %v666, %v1097
        %v1099 = vpop.f32.mrb[0].mxu0
        %1100 = vmatprep.mubr.bf16.mxu0 0
        %1101 = vmatmul.mubr.bf16.gmra.mrb[0].mxu0 %v829
        %v1102 = vpop.f32.mrb[0].mxu0
        %v1103 = vadd.f32 %v666, %v1102
        %v1104 = vpop.f32.mrb[0].mxu0
        %v1105 = vpop.f32.mrb[0].mxu0
        %v1106 = vadd.f32 %v666, %v1105
        %v1107 = vpop.f32.mrb[0].mxu0
        %1108 = vmatprep.mubr.bf16.mxu0 0
        %1109 = vmatmul.mubr.bf16.gmra.mrb[0].mxu0 %v830
        %v1110 = vpop.f32.mrb[0].mxu0
        %v1111 = vadd.f32 %v666, %v1110
        %v1112 = vpop.f32.mrb[0].mxu0
        %v1113 = vpop.f32.mrb[0].mxu0
        %v1114 = vadd.f32 %v666, %v1113
        %v1115 = vpop.f32.mrb[0].mxu0
        %1116 = vmatprep.mubr.bf16.mxu0 0
        %1117 = vmatmul.mubr.bf16.gmra.mrb[0].mxu0 %v831
        %v1118 = vpop.f32.mrb[0].mxu0
        %v1119 = vadd.f32 %v666, %v1118
        %v1120 = vpop.f32.mrb[0].mxu0
        %v1121 = vpop.f32.mrb[0].mxu0
        %v1122 = vadd.f32 %v666, %v1121
        %v1123 = vpop.f32.mrb[0].mxu0
        %1124 = vmatprep.mubr.bf16.mxu0 0
        %1125 = vmatmul.mubr.bf16.gmra.mrb[0].mxu0 %v832
        %v1126 = vpop.f32.mrb[0].mxu0
        %v1127 = vadd.f32 %v666, %v1126
        %v1128 = vpop.f32.mrb[0].mxu0
        %v1129 = vpop.f32.mrb[0].mxu0
        %v1130 = vadd.f32 %v666, %v1129
        %v1131 = vpop.f32.mrb[0].mxu0
        %1132 = vmatprep.mubr.bf16.mxu0 0
        %1133 = vmatmul.mubr.bf16.gmra.mrb[0].mxu0 %v833
        %v1134 = vpop.f32.mrb[0].mxu0
        %v1135 = vadd.f32 %v666, %v1134
        %v1136 = vpop.f32.mrb[0].mxu0
        %v1137 = vpop.f32.mrb[0].mxu0
        %v1138 = vadd.f32 %v666, %v1137
        %v1139 = vpop.f32.mrb[0].mxu0
        %1140 = vmatprep.mubr.bf16.mxu0 0
        %1141 = vmatmul.mubr.bf16.gmra.mrb[0].mxu0 %v834
        %v1142 = vpop.f32.mrb[0].mxu0
        %v1143 = vadd.f32 %v666, %v1142
        %v1144 = vpop.f32.mrb[0].mxu0
        %v1145 = vpop.f32.mrb[0].mxu0
        %v1146 = vadd.f32 %v666, %v1145
        %v1147 = vpop.f32.mrb[0].mxu0
        %1148 = vmatprep.mubr.bf16.mxu0 0
        %1149 = vmatmul.mubr.bf16.gmra.mrb[0].mxu0 %v835
        %v1150 = vpop.f32.mrb[0].mxu0
        %v1151 = vadd.f32 %v666, %v1150
        %v1152 = vpop.f32.mrb[0].mxu0
        %v1153 = vpop.f32.mrb[0].mxu0
        %v1154 = vadd.f32 %v666, %v1153
        %v1155 = vpop.f32.mrb[0].mxu0
        %1156 = vmatprep.mubr.bf16.mxu0 0
        %1157 = vmatmul.mubr.bf16.gmra.mrb[0].mxu0 %v836
        %v1158 = vpop.f32.mrb[0].mxu0
        %v1159 = vadd.f32 %v666, %v1158
        %v1160 = vpop.f32.mrb[0].mxu0
        %v1161 = vpop.f32.mrb[0].mxu0
        %v1162 = vadd.f32 %v666, %v1161
        %v1163 = vpop.f32.mrb[0].mxu0
        %1164 = vmatprep.mubr.bf16.mxu0 0
        %1165 = vmatmul.mubr.bf16.gmra.mrb[0].mxu0 %v837
        %v1166 = vpop.f32.mrb[0].mxu0
        %v1167 = vadd.f32 %v666, %v1166
        %v1168 = vpop.f32.mrb[0].mxu0
        %v1169 = vpop.f32.mrb[0].mxu0
        %v1170 = vadd.f32 %v666, %v1169
        %v1171 = vpop.f32.mrb[0].mxu0
        %1172 = vmatprep.mubr.bf16.mxu0 0
        %1173 = vmatmul.mubr.bf16.gmra.mrb[0].mxu0 %v838
        %v1174 = vpop.f32.mrb[0].mxu0
        %v1175 = vadd.f32 %v666, %v1174
        %v1176 = vpop.f32.mrb[0].mxu0
        %v1177 = vpop.f32.mrb[0].mxu0
        %v1178 = vadd.f32 %v666, %v1177
        %v1179 = vpop.f32.mrb[0].mxu0
        %1180 = vmatprep.mubr.bf16.mxu0 0
        %1181 = vmatmul.mubr.bf16.gmra.mrb[0].mxu0 %v839
        %v1182 = vpop.f32.mrb[0].mxu0
        %v1183 = vadd.f32 %v666, %v1182
        %v1184 = vpop.f32.mrb[0].mxu0
        %v1185 = vpop.f32.mrb[0].mxu0
        %v1186 = vadd.f32 %v666, %v1185
        %v1187 = vpop.f32.mrb[0].mxu0
        %1188 = vmatprep.mubr.bf16.mxu0 0
        %1189 = vmatmul.mubr.bf16.gmra.mrb[0].mxu0 %v840
        %v1190 = vpop.f32.mrb[0].mxu0
        %v1191 = vadd.f32 %v666, %v1190
        %v1192 = vpop.f32.mrb[0].mxu0
        %v1193 = vpop.f32.mrb[0].mxu0
        %v1194 = vadd.f32 %v666, %v1193
        %v1195 = vpop.f32.mrb[0].mxu0
        %1196 = vmatprep.mubr.bf16.mxu0 0
        %1197 = vmatmul.mubr.bf16.gmra.mrb[0].mxu0 %v841
        %v1198 = vpop.f32.mrb[0].mxu0
        %v1199 = vadd.f32 %v666, %v1198
        %v1200 = vpop.f32.mrb[0].mxu0
        %v1201 = vpop.f32.mrb[0].mxu0
        %v1202 = vadd.f32 %v666, %v1201
        %v1203 = vpop.f32.mrb[0].mxu0
        %1204 = vmatprep.mubr.bf16.mxu0 0
        %1205 = vmatmul.mubr.bf16.gmra.mrb[0].mxu0 %v842
        %v1206 = vpop.f32.mrb[0].mxu0
        %v1207 = vadd.f32 %v666, %v1206
        %v1208 = vpop.f32.mrb[0].mxu0
        %v1209 = vpop.f32.mrb[0].mxu0
        %v1210 = vadd.f32 %v666, %v1209
        %v1211 = vpop.f32.mrb[0].mxu0
        %1212 = vmatprep.mubr.bf16.mxu0 0
        %1213 = vmatmul.mubr.bf16.gmra.mrb[0].mxu0 %v843
        %v1214 = vpop.f32.mrb[0].mxu0
        %v1215 = vadd.f32 %v666, %v1214
        %v1216 = vpop.f32.mrb[0].mxu0
        %v1217 = vpop.f32.mrb[0].mxu0
        %v1218 = vadd.f32 %v666, %v1217
        %v1219 = vpop.f32.mrb[0].mxu0
        %1220 = vmatprep.mubr.bf16.mxu0 0
        %1221 = vmatmul.mubr.bf16.gmra.mrb[0].mxu0 %v844
        %v1222 = vpop.f32.mrb[0].mxu0
        %v1223 = vadd.f32 %v666, %v1222
        %v1224 = vpop.f32.mrb[0].mxu0
        %v1225 = vpop.f32.mrb[0].mxu0
        %v1226 = vadd.f32 %v666, %v1225
        %v1227 = vpop.f32.mrb[0].mxu0
        %1228 = vmatprep.mubr.bf16.mxu0 0
        %1229 = vmatmul.mubr.bf16.gmra.mrb[0].mxu0 %v845
        %v1230 = vpop.f32.mrb[0].mxu0
        %v1231 = vadd.f32 %v666, %v1230
        %v1232 = vpop.f32.mrb[0].mxu0
        %v1233 = vpop.f32.mrb[0].mxu0
        %v1234 = vadd.f32 %v666, %v1233
        %v1235 = vpop.f32.mrb[0].mxu0
        %1236 = vmatprep.mubr.bf16.mxu0 0
        %1237 = vmatmul.mubr.bf16.gmra.mrb[0].mxu0 %v846
        %v1238 = vpop.f32.mrb[0].mxu0
        %v1239 = vadd.f32 %v666, %v1238
        %v1240 = vpop.f32.mrb[0].mxu0
        %v1241 = vpop.f32.mrb[0].mxu0
        %v1242 = vadd.f32 %v666, %v1241
        %v1243 = vpop.f32.mrb[0].mxu0
        %1244 = vmatprep.mubr.bf16.mxu0 0
        %1245 = vmatmul.mubr.bf16.gmra.mrb[0].mxu0 %v847
        %v1246 = vpop.f32.mrb[0].mxu0
        %v1247 = vadd.f32 %v666, %v1246
        %v1248 = vpop.f32.mrb[0].mxu0
        %v1249 = vpop.f32.mrb[0].mxu0
        %v1250 = vadd.f32 %v666, %v1249
        %v1251 = vpop.f32.mrb[0].mxu0
        %1252 = vdwg.mxu0
        %v1253 = vadd.f32 %v967, %v572
        %v1254 = vadd.f32 %v970, %v572
        %v1255 = vadd.f32 %v975, %v572
        %v1256 = vadd.f32 %v978, %v572
        %v1257 = vadd.f32 %v983, %v572
        %v1258 = vadd.f32 %v986, %v572
        %v1259 = vadd.f32 %v991, %v572
        %v1260 = vadd.f32 %v994, %v572
        %v1261 = vadd.f32 %v999, %v572
        %v1262 = vadd.f32 %v1002, %v572
        %v1263 = vadd.f32 %v1007, %v572
        %v1264 = vadd.f32 %v1010, %v572
        %v1265 = vadd.f32 %v1015, %v572
        %v1266 = vadd.f32 %v1018, %v572
        %v1267 = vadd.f32 %v1023, %v572
        %v1268 = vadd.f32 %v1026, %v572
        %v1269 = vadd.f32 %v1031, %v572
        %v1270 = vadd.f32 %v1034, %v572
        %v1271 = vadd.f32 %v1039, %v572
        %v1272 = vadd.f32 %v1042, %v572
        %v1273 = vadd.f32 %v1047, %v572
        %v1274 = vadd.f32 %v1050, %v572
        %v1275 = vadd.f32 %v1055, %v572
        %v1276 = vadd.f32 %v1058, %v572
        %v1277 = vadd.f32 %v1063, %v572
        %v1278 = vadd.f32 %v1066, %v572
        %v1279 = vadd.f32 %v1071, %v572
        %v1280 = vadd.f32 %v1074, %v572
        %v1281 = vadd.f32 %v1079, %v572
        %v1282 = vadd.f32 %v1082, %v572
        %v1283 = vadd.f32 %v1087, %v572
        %v1284 = vadd.f32 %v1090, %v572
        %v1285 = vadd.f32 %v1095, %v572
        %v1286 = vadd.f32 %v1098, %v572
        %v1287 = vadd.f32 %v1103, %v572
        %v1288 = vadd.f32 %v1106, %v572
        %v1289 = vadd.f32 %v1111, %v572
        %v1290 = vadd.f32 %v1114, %v572
        %v1291 = vadd.f32 %v1119, %v572
        %v1292 = vadd.f32 %v1122, %v572
        %v1293 = vadd.f32 %v1127, %v572
        %v1294 = vadd.f32 %v1130, %v572
        %v1295 = vadd.f32 %v1135, %v572
        %v1296 = vadd.f32 %v1138, %v572
        %v1297 = vadd.f32 %v1143, %v572
        %v1298 = vadd.f32 %v1146, %v572
        %v1299 = vadd.f32 %v1151, %v572
        %v1300 = vadd.f32 %v1154, %v572
        %v1301 = vadd.f32 %v1159, %v572
        %v1302 = vadd.f32 %v1162, %v572
        %v1303 = vadd.f32 %v1167, %v572
        %v1304 = vadd.f32 %v1170, %v572
        %v1305 = vadd.f32 %v1175, %v572
        %v1306 = vadd.f32 %v1178, %v572
        %v1307 = vadd.f32 %v1183, %v572
        %v1308 = vadd.f32 %v1186, %v572
        %v1309 = vadd.f32 %v1191, %v572
        %v1310 = vadd.f32 %v1194, %v572
        %v1311 = vadd.f32 %v1199, %v572
        %v1312 = vadd.f32 %v1202, %v572
        %v1313 = vadd.f32 %v1207, %v572
        %v1314 = vadd.f32 %v1210, %v572
        %v1315 = vadd.f32 %v1215, %v572
        %v1316 = vadd.f32 %v1218, %v572
        %v1317 = vadd.f32 %v1223, %v572
        %v1318 = vadd.f32 %v1226, %v572
        %v1319 = vadd.f32 %v1231, %v572
        %v1320 = vadd.f32 %v1234, %v572
        %v1321 = vadd.f32 %v1239, %v572
        %v1322 = vadd.f32 %v1242, %v572
        %v1323 = vadd.f32 %v1247, %v572
        %v1324 = vadd.f32 %v1250, %v572
        %v1325 = vxor.u32 %v1253, 2147483648
        %v1326 = vxor.u32 %v1254, 2147483648
        %v1327 = vxor.u32 %v1255, 2147483648
        %v1328 = vxor.u32 %v1256, 2147483648
        %v1329 = vxor.u32 %v1257, 2147483648
        %v1330 = vxor.u32 %v1258, 2147483648
        %v1331 = vxor.u32 %v1259, 2147483648
        %v1332 = vxor.u32 %v1260, 2147483648
        %v1333 = vxor.u32 %v1261, 2147483648
        %v1334 = vxor.u32 %v1262, 2147483648
        %v1335 = vxor.u32 %v1263, 2147483648
        %v1336 = vxor.u32 %v1264, 2147483648
        %v1337 = vxor.u32 %v1265, 2147483648
        %v1338 = vxor.u32 %v1266, 2147483648
        %v1339 = vxor.u32 %v1267, 2147483648
        %v1340 = vxor.u32 %v1268, 2147483648
        %v1341 = vxor.u32 %v1269, 2147483648
        %v1342 = vxor.u32 %v1270, 2147483648
        %v1343 = vxor.u32 %v1271, 2147483648
        %v1344 = vxor.u32 %v1272, 2147483648
        %v1345 = vxor.u32 %v1273, 2147483648
        %v1346 = vxor.u32 %v1274, 2147483648
        %v1347 = vxor.u32 %v1275, 2147483648
        %v1348 = vxor.u32 %v1276, 2147483648
        %v1349 = vxor.u32 %v1277, 2147483648
        %v1350 = vxor.u32 %v1278, 2147483648
        %v1351 = vxor.u32 %v1279, 2147483648
        %v1352 = vxor.u32 %v1280, 2147483648
        %v1353 = vxor.u32 %v1281, 2147483648
        %v1354 = vxor.u32 %v1282, 2147483648
        %v1355 = vxor.u32 %v1283, 2147483648
        %v1356 = vxor.u32 %v1284, 2147483648
        %v1357 = vxor.u32 %v1285, 2147483648
        %v1358 = vxor.u32 %v1286, 2147483648
        %v1359 = vxor.u32 %v1287, 2147483648
        %v1360 = vxor.u32 %v1288, 2147483648
        %v1361 = vxor.u32 %v1289, 2147483648
        %v1362 = vxor.u32 %v1290, 2147483648
        %v1363 = vxor.u32 %v1291, 2147483648
        %v1364 = vxor.u32 %v1292, 2147483648
        %v1365 = vxor.u32 %v1293, 2147483648
        %v1366 = vxor.u32 %v1294, 2147483648
        %v1367 = vxor.u32 %v1295, 2147483648
        %v1368 = vxor.u32 %v1296, 2147483648
        %v1369 = vxor.u32 %v1297, 2147483648
        %v1370 = vxor.u32 %v1298, 2147483648
        %v1371 = vxor.u32 %v1299, 2147483648
        %v1372 = vxor.u32 %v1300, 2147483648
        %v1373 = vxor.u32 %v1301, 2147483648
        %v1374 = vxor.u32 %v1302, 2147483648
        %v1375 = vxor.u32 %v1303, 2147483648
        %v1376 = vxor.u32 %v1304, 2147483648
        %v1377 = vxor.u32 %v1305, 2147483648
        %v1378 = vxor.u32 %v1306, 2147483648
        %v1379 = vxor.u32 %v1307, 2147483648
        %v1380 = vxor.u32 %v1308, 2147483648
        %v1381 = vxor.u32 %v1309, 2147483648
        %v1382 = vxor.u32 %v1310, 2147483648
        %v1383 = vxor.u32 %v1311, 2147483648
        %v1384 = vxor.u32 %v1312, 2147483648
        %v1385 = vxor.u32 %v1313, 2147483648
        %v1386 = vxor.u32 %v1314, 2147483648
        %v1387 = vxor.u32 %v1315, 2147483648
        %v1388 = vxor.u32 %v1316, 2147483648
        %v1389 = vxor.u32 %v1317, 2147483648
        %v1390 = vxor.u32 %v1318, 2147483648
        %v1391 = vxor.u32 %v1319, 2147483648
        %v1392 = vxor.u32 %v1320, 2147483648
        %v1393 = vxor.u32 %v1321, 2147483648
        %v1394 = vxor.u32 %v1322, 2147483648
        %v1395 = vxor.u32 %v1323, 2147483648
        %v1396 = vxor.u32 %v1324, 2147483648
        %v1397 = vmul.f32 %v1325, 1.442695
        %v1398 = vpow.pop %v1397
        %v1399 = vmul.f32 %v1326, 1.442695
        %v1400 = vpow.pop %v1399
        %v1401 = vmul.f32 %v1327, 1.442695
        %v1402 = vpow.pop %v1401
        %v1403 = vmul.f32 %v1328, 1.442695
        %v1404 = vpow.pop %v1403
        %v1405 = vmul.f32 %v1329, 1.442695
        %v1406 = vpow.pop %v1405
        %v1407 = vmul.f32 %v1330, 1.442695
        %v1408 = vpow.pop %v1407
        %v1409 = vmul.f32 %v1331, 1.442695
        %v1410 = vpow.pop %v1409
        %v1411 = vmul.f32 %v1332, 1.442695
        %v1412 = vpow.pop %v1411
        %v1413 = vmul.f32 %v1333, 1.442695
        %v1414 = vpow.pop %v1413
        %v1415 = vmul.f32 %v1334, 1.442695
        %v1416 = vpow.pop %v1415
        %v1417 = vmul.f32 %v1335, 1.442695
        %v1418 = vpow.pop %v1417
        %v1419 = vmul.f32 %v1336, 1.442695
        %v1420 = vpow.pop %v1419
        %v1421 = vmul.f32 %v1337, 1.442695
        %v1422 = vpow.pop %v1421
        %v1423 = vmul.f32 %v1338, 1.442695
        %v1424 = vpow.pop %v1423
        %v1425 = vmul.f32 %v1339, 1.442695
        %v1426 = vpow.pop %v1425
        %v1427 = vmul.f32 %v1340, 1.442695
        %v1428 = vpow.pop %v1427
        %v1429 = vmul.f32 %v1341, 1.442695
        %v1430 = vpow.pop %v1429
        %v1431 = vmul.f32 %v1342, 1.442695
        %v1432 = vpow.pop %v1431
        %v1433 = vmul.f32 %v1343, 1.442695
        %v1434 = vpow.pop %v1433
        %v1435 = vmul.f32 %v1344, 1.442695
        %v1436 = vpow.pop %v1435
        %v1437 = vmul.f32 %v1345, 1.442695
        %v1438 = vpow.pop %v1437
        %v1439 = vmul.f32 %v1346, 1.442695
        %v1440 = vpow.pop %v1439
        %v1441 = vmul.f32 %v1347, 1.442695
        %v1442 = vpow.pop %v1441
        %v1443 = vmul.f32 %v1348, 1.442695
        %v1444 = vpow.pop %v1443
        %v1445 = vmul.f32 %v1349, 1.442695
        %v1446 = vpow.pop %v1445
        %v1447 = vmul.f32 %v1350, 1.442695
        %v1448 = vpow.pop %v1447
        %v1449 = vmul.f32 %v1351, 1.442695
        %v1450 = vpow.pop %v1449
        %v1451 = vmul.f32 %v1352, 1.442695
        %v1452 = vpow.pop %v1451
        %v1453 = vmul.f32 %v1353, 1.442695
        %v1454 = vpow.pop %v1453
        %v1455 = vmul.f32 %v1354, 1.442695
        %v1456 = vpow.pop %v1455
        %v1457 = vmul.f32 %v1355, 1.442695
        %v1458 = vpow.pop %v1457
        %v1459 = vmul.f32 %v1356, 1.442695
        %v1460 = vpow.pop %v1459
        %v1461 = vmul.f32 %v1357, 1.442695
        %v1462 = vpow.pop %v1461
        %v1463 = vmul.f32 %v1358, 1.442695
        %v1464 = vpow.pop %v1463
        %v1465 = vmul.f32 %v1359, 1.442695
        %v1466 = vpow.pop %v1465
        %v1467 = vmul.f32 %v1360, 1.442695
        %v1468 = vpow.pop %v1467
        %v1469 = vmul.f32 %v1361, 1.442695
        %v1470 = vpow.pop %v1469
        %v1471 = vmul.f32 %v1362, 1.442695
        %v1472 = vpow.pop %v1471
        %v1473 = vmul.f32 %v1363, 1.442695
        %v1474 = vpow.pop %v1473
        %v1475 = vmul.f32 %v1364, 1.442695
        %v1476 = vpow.pop %v1475
        %v1477 = vmul.f32 %v1365, 1.442695
        %v1478 = vpow.pop %v1477
        %v1479 = vmul.f32 %v1366, 1.442695
        %v1480 = vpow.pop %v1479
        %v1481 = vmul.f32 %v1367, 1.442695
        %v1482 = vpow.pop %v1481
        %v1483 = vmul.f32 %v1368, 1.442695
        %v1484 = vpow.pop %v1483
        %v1485 = vmul.f32 %v1369, 1.442695
        %v1486 = vpow.pop %v1485
        %v1487 = vmul.f32 %v1370, 1.442695
        %v1488 = vpow.pop %v1487
        %v1489 = vmul.f32 %v1371, 1.442695
        %v1490 = vpow.pop %v1489
        %v1491 = vmul.f32 %v1372, 1.442695
        %v1492 = vpow.pop %v1491
        %v1493 = vmul.f32 %v1373, 1.442695
        %v1494 = vpow.pop %v1493
        %v1495 = vmul.f32 %v1374, 1.442695
        %v1496 = vpow.pop %v1495
        %v1497 = vmul.f32 %v1375, 1.442695
        %v1498 = vpow.pop %v1497
        %v1499 = vmul.f32 %v1376, 1.442695
        %v1500 = vpow.pop %v1499
        %v1501 = vmul.f32 %v1377, 1.442695
        %v1502 = vpow.pop %v1501
        %v1503 = vmul.f32 %v1378, 1.442695
        %v1504 = vpow.pop %v1503
        %v1505 = vmul.f32 %v1379, 1.442695
        %v1506 = vpow.pop %v1505
        %v1507 = vmul.f32 %v1380, 1.442695
        %v1508 = vpow.pop %v1507
        %v1509 = vmul.f32 %v1381, 1.442695
        %v1510 = vpow.pop %v1509
        %v1511 = vmul.f32 %v1382, 1.442695
        %v1512 = vpow.pop %v1511
        %v1513 = vmul.f32 %v1383, 1.442695
        %v1514 = vpow.pop %v1513
        %v1515 = vmul.f32 %v1384, 1.442695
        %v1516 = vpow.pop %v1515
        %v1517 = vmul.f32 %v1385, 1.442695
        %v1518 = vpow.pop %v1517
        %v1519 = vmul.f32 %v1386, 1.442695
        %v1520 = vpow.pop %v1519
        %v1521 = vmul.f32 %v1387, 1.442695
        %v1522 = vpow.pop %v1521
        %v1523 = vmul.f32 %v1388, 1.442695
        %v1524 = vpow.pop %v1523
        %v1525 = vmul.f32 %v1389, 1.442695
        %v1526 = vpow.pop %v1525
        %v1527 = vmul.f32 %v1390, 1.442695
        %v1528 = vpow.pop %v1527
        %v1529 = vmul.f32 %v1391, 1.442695
        %v1530 = vpow.pop %v1529
        %v1531 = vmul.f32 %v1392, 1.442695
        %v1532 = vpow.pop %v1531
        %v1533 = vmul.f32 %v1393, 1.442695
        %v1534 = vpow.pop %v1533
        %v1535 = vmul.f32 %v1394, 1.442695
        %v1536 = vpow.pop %v1535
        %v1537 = vmul.f32 %v1395, 1.442695
        %v1538 = vpow.pop %v1537
        %v1539 = vmul.f32 %v1396, 1.442695
        %v1540 = vpow.pop %v1539
        %v1541 = vadd.f32 %v1398, 1.0
        %v1542 = vadd.f32 %v1400, 1.0
        %v1543 = vadd.f32 %v1402, 1.0
        %v1544 = vadd.f32 %v1404, 1.0
        %v1545 = vadd.f32 %v1406, 1.0
        %v1546 = vadd.f32 %v1408, 1.0
        %v1547 = vadd.f32 %v1410, 1.0
        %v1548 = vadd.f32 %v1412, 1.0
        %v1549 = vadd.f32 %v1414, 1.0
        %v1550 = vadd.f32 %v1416, 1.0
        %v1551 = vadd.f32 %v1418, 1.0
        %v1552 = vadd.f32 %v1420, 1.0
        %v1553 = vadd.f32 %v1422, 1.0
        %v1554 = vadd.f32 %v1424, 1.0
        %v1555 = vadd.f32 %v1426, 1.0
        %v1556 = vadd.f32 %v1428, 1.0
        %v1557 = vadd.f32 %v1430, 1.0
        %v1558 = vadd.f32 %v1432, 1.0
        %v1559 = vadd.f32 %v1434, 1.0
        %v1560 = vadd.f32 %v1436, 1.0
        %v1561 = vadd.f32 %v1438, 1.0
        %v1562 = vadd.f32 %v1440, 1.0
        %v1563 = vadd.f32 %v1442, 1.0
        %v1564 = vadd.f32 %v1444, 1.0
        %v1565 = vadd.f32 %v1446, 1.0
        %v1566 = vadd.f32 %v1448, 1.0
        %v1567 = vadd.f32 %v1450, 1.0
        %v1568 = vadd.f32 %v1452, 1.0
        %v1569 = vadd.f32 %v1454, 1.0
        %v1570 = vadd.f32 %v1456, 1.0
        %v1571 = vadd.f32 %v1458, 1.0
        %v1572 = vadd.f32 %v1460, 1.0
        %v1573 = vadd.f32 %v1462, 1.0
        %v1574 = vadd.f32 %v1464, 1.0
        %v1575 = vadd.f32 %v1466, 1.0
        %v1576 = vadd.f32 %v1468, 1.0
        %v1577 = vadd.f32 %v1470, 1.0
        %v1578 = vadd.f32 %v1472, 1.0
        %v1579 = vadd.f32 %v1474, 1.0
        %v1580 = vadd.f32 %v1476, 1.0
        %v1581 = vadd.f32 %v1478, 1.0
        %v1582 = vadd.f32 %v1480, 1.0
        %v1583 = vadd.f32 %v1482, 1.0
        %v1584 = vadd.f32 %v1484, 1.0
        %v1585 = vadd.f32 %v1486, 1.0
        %v1586 = vadd.f32 %v1488, 1.0
        %v1587 = vadd.f32 %v1490, 1.0
        %v1588 = vadd.f32 %v1492, 1.0
        %v1589 = vadd.f32 %v1494, 1.0
        %v1590 = vadd.f32 %v1496, 1.0
        %v1591 = vadd.f32 %v1498, 1.0
        %v1592 = vadd.f32 %v1500, 1.0
        %v1593 = vadd.f32 %v1502, 1.0
        %v1594 = vadd.f32 %v1504, 1.0
        %v1595 = vadd.f32 %v1506, 1.0
        %v1596 = vadd.f32 %v1508, 1.0
        %v1597 = vadd.f32 %v1510, 1.0
        %v1598 = vadd.f32 %v1512, 1.0
        %v1599 = vadd.f32 %v1514, 1.0
        %v1600 = vadd.f32 %v1516, 1.0
        %v1601 = vadd.f32 %v1518, 1.0
        %v1602 = vadd.f32 %v1520, 1.0
        %v1603 = vadd.f32 %v1522, 1.0
        %v1604 = vadd.f32 %v1524, 1.0
        %v1605 = vadd.f32 %v1526, 1.0
        %v1606 = vadd.f32 %v1528, 1.0
        %v1607 = vadd.f32 %v1530, 1.0
        %v1608 = vadd.f32 %v1532, 1.0
        %v1609 = vadd.f32 %v1534, 1.0
        %v1610 = vadd.f32 %v1536, 1.0
        %v1611 = vadd.f32 %v1538, 1.0
        %v1612 = vadd.f32 %v1540, 1.0
        %v1613 = vrcp.pop %v1541
        %v1614 = vmul.f32 1.0, %v1613
        %v1615 = vrcp.pop %v1542
        %v1616 = vmul.f32 1.0, %v1615
        %v1617 = vrcp.pop %v1543
        %v1618 = vmul.f32 1.0, %v1617
        %v1619 = vrcp.pop %v1544
        %v1620 = vmul.f32 1.0, %v1619
        %v1621 = vrcp.pop %v1545
        %v1622 = vmul.f32 1.0, %v1621
        %v1623 = vrcp.pop %v1546
        %v1624 = vmul.f32 1.0, %v1623
        %v1625 = vrcp.pop %v1547
        %v1626 = vmul.f32 1.0, %v1625
        %v1627 = vrcp.pop %v1548
        %v1628 = vmul.f32 1.0, %v1627
        %v1629 = vrcp.pop %v1549
        %v1630 = vmul.f32 1.0, %v1629
        %v1631 = vrcp.pop %v1550
        %v1632 = vmul.f32 1.0, %v1631
        %v1633 = vrcp.pop %v1551
        %v1634 = vmul.f32 1.0, %v1633
        %v1635 = vrcp.pop %v1552
        %v1636 = vmul.f32 1.0, %v1635
        %v1637 = vrcp.pop %v1553
        %v1638 = vmul.f32 1.0, %v1637
        %v1639 = vrcp.pop %v1554
        %v1640 = vmul.f32 1.0, %v1639
        %v1641 = vrcp.pop %v1555
        %v1642 = vmul.f32 1.0, %v1641
        %v1643 = vrcp.pop %v1556
        %v1644 = vmul.f32 1.0, %v1643
        %v1645 = vrcp.pop %v1557
        %v1646 = vmul.f32 1.0, %v1645
        %v1647 = vrcp.pop %v1558
        %v1648 = vmul.f32 1.0, %v1647
        %v1649 = vrcp.pop %v1559
        %v1650 = vmul.f32 1.0, %v1649
        %v1651 = vrcp.pop %v1560
        %v1652 = vmul.f32 1.0, %v1651
        %v1653 = vrcp.pop %v1561
        %v1654 = vmul.f32 1.0, %v1653
        %v1655 = vrcp.pop %v1562
        %v1656 = vmul.f32 1.0, %v1655
        %v1657 = vrcp.pop %v1563
        %v1658 = vmul.f32 1.0, %v1657
        %v1659 = vrcp.pop %v1564
        %v1660 = vmul.f32 1.0, %v1659
        %v1661 = vrcp.pop %v1565
        %v1662 = vmul.f32 1.0, %v1661
        %v1663 = vrcp.pop %v1566
        %v1664 = vmul.f32 1.0, %v1663
        %v1665 = vrcp.pop %v1567
        %v1666 = vmul.f32 1.0, %v1665
        %v1667 = vrcp.pop %v1568
        %v1668 = vmul.f32 1.0, %v1667
        %v1669 = vrcp.pop %v1569
        %v1670 = vmul.f32 1.0, %v1669
        %v1671 = vrcp.pop %v1570
        %v1672 = vmul.f32 1.0, %v1671
        %v1673 = vrcp.pop %v1571
        %v1674 = vmul.f32 1.0, %v1673
        %v1675 = vrcp.pop %v1572
        %v1676 = vmul.f32 1.0, %v1675
        %v1677 = vrcp.pop %v1573
        %v1678 = vmul.f32 1.0, %v1677
        %v1679 = vrcp.pop %v1574
        %v1680 = vmul.f32 1.0, %v1679
        %v1681 = vrcp.pop %v1575
        %v1682 = vmul.f32 1.0, %v1681
        %v1683 = vrcp.pop %v1576
        %v1684 = vmul.f32 1.0, %v1683
        %v1685 = vrcp.pop %v1577
        %v1686 = vmul.f32 1.0, %v1685
        %v1687 = vrcp.pop %v1578
        %v1688 = vmul.f32 1.0, %v1687
        %v1689 = vrcp.pop %v1579
        %v1690 = vmul.f32 1.0, %v1689
        %v1691 = vrcp.pop %v1580
        %v1692 = vmul.f32 1.0, %v1691
        %v1693 = vrcp.pop %v1581
        %v1694 = vmul.f32 1.0, %v1693
        %v1695 = vrcp.pop %v1582
        %v1696 = vmul.f32 1.0, %v1695
        %v1697 = vrcp.pop %v1583
        %v1698 = vmul.f32 1.0, %v1697
        %v1699 = vrcp.pop %v1584
        %v1700 = vmul.f32 1.0, %v1699
        %v1701 = vrcp.pop %v1585
        %v1702 = vmul.f32 1.0, %v1701
        %v1703 = vrcp.pop %v1586
        %v1704 = vmul.f32 1.0, %v1703
        %v1705 = vrcp.pop %v1587
        %v1706 = vmul.f32 1.0, %v1705
        %v1707 = vrcp.pop %v1588
        %v1708 = vmul.f32 1.0, %v1707
        %v1709 = vrcp.pop %v1589
        %v1710 = vmul.f32 1.0, %v1709
        %v1711 = vrcp.pop %v1590
        %v1712 = vmul.f32 1.0, %v1711
        %v1713 = vrcp.pop %v1591
        %v1714 = vmul.f32 1.0, %v1713
        %v1715 = vrcp.pop %v1592
        %v1716 = vmul.f32 1.0, %v1715
        %v1717 = vrcp.pop %v1593
        %v1718 = vmul.f32 1.0, %v1717
        %v1719 = vrcp.pop %v1594
        %v1720 = vmul.f32 1.0, %v1719
        %v1721 = vrcp.pop %v1595
        %v1722 = vmul.f32 1.0, %v1721
        %v1723 = vrcp.pop %v1596
        %v1724 = vmul.f32 1.0, %v1723
        %v1725 = vrcp.pop %v1597
        %v1726 = vmul.f32 1.0, %v1725
        %v1727 = vrcp.pop %v1598
        %v1728 = vmul.f32 1.0, %v1727
        %v1729 = vrcp.pop %v1599
        %v1730 = vmul.f32 1.0, %v1729
        %v1731 = vrcp.pop %v1600
        %v1732 = vmul.f32 1.0, %v1731
        %v1733 = vrcp.pop %v1601
        %v1734 = vmul.f32 1.0, %v1733
        %v1735 = vrcp.pop %v1602
        %v1736 = vmul.f32 1.0, %v1735
        %v1737 = vrcp.pop %v1603
        %v1738 = vmul.f32 1.0, %v1737
        %v1739 = vrcp.pop %v1604
        %v1740 = vmul.f32 1.0, %v1739
        %v1741 = vrcp.pop %v1605
        %v1742 = vmul.f32 1.0, %v1741
        %v1743 = vrcp.pop %v1606
        %v1744 = vmul.f32 1.0, %v1743
        %v1745 = vrcp.pop %v1607
        %v1746 = vmul.f32 1.0, %v1745
        %v1747 = vrcp.pop %v1608
        %v1748 = vmul.f32 1.0, %v1747
        %v1749 = vrcp.pop %v1609
        %v1750 = vmul.f32 1.0, %v1749
        %v1751 = vrcp.pop %v1610
        %v1752 = vmul.f32 1.0, %v1751
        %v1753 = vrcp.pop %v1611
        %v1754 = vmul.f32 1.0, %v1753
        %v1755 = vrcp.pop %v1612
        %v1756 = vmul.f32 1.0, %v1755
        %v1757 = vmul.f32 %v1253, %v1614
        %v1758 = vmul.f32 %v1254, %v1616
        %v1759 = vmul.f32 %v1255, %v1618
        %v1760 = vmul.f32 %v1256, %v1620
        %v1761 = vmul.f32 %v1257, %v1622
        %v1762 = vmul.f32 %v1258, %v1624
        %v1763 = vmul.f32 %v1259, %v1626
        %v1764 = vmul.f32 %v1260, %v1628
        %v1765 = vmul.f32 %v1261, %v1630
        %v1766 = vmul.f32 %v1262, %v1632
        %v1767 = vmul.f32 %v1263, %v1634
        %v1768 = vmul.f32 %v1264, %v1636
        %v1769 = vmul.f32 %v1265, %v1638
        %v1770 = vmul.f32 %v1266, %v1640
        %v1771 = vmul.f32 %v1267, %v1642
        %v1772 = vmul.f32 %v1268, %v1644
        %v1773 = vmul.f32 %v1269, %v1646
        %v1774 = vmul.f32 %v1270, %v1648
        %v1775 = vmul.f32 %v1271, %v1650
        %v1776 = vmul.f32 %v1272, %v1652
        %v1777 = vmul.f32 %v1273, %v1654
        %v1778 = vmul.f32 %v1274, %v1656
        %v1779 = vmul.f32 %v1275, %v1658
        %v1780 = vmul.f32 %v1276, %v1660
        %v1781 = vmul.f32 %v1277, %v1662
        %v1782 = vmul.f32 %v1278, %v1664
        %v1783 = vmul.f32 %v1279, %v1666
        %v1784 = vmul.f32 %v1280, %v1668
        %v1785 = vmul.f32 %v1281, %v1670
        %v1786 = vmul.f32 %v1282, %v1672
        %v1787 = vmul.f32 %v1283, %v1674
        %v1788 = vmul.f32 %v1284, %v1676
        %v1789 = vmul.f32 %v1285, %v1678
        %v1790 = vmul.f32 %v1286, %v1680
        %v1791 = vmul.f32 %v1287, %v1682
        %v1792 = vmul.f32 %v1288, %v1684
        %v1793 = vmul.f32 %v1289, %v1686
        %v1794 = vmul.f32 %v1290, %v1688
        %v1795 = vmul.f32 %v1291, %v1690
        %v1796 = vmul.f32 %v1292, %v1692
        %v1797 = vmul.f32 %v1293, %v1694
        %v1798 = vmul.f32 %v1294, %v1696
        %v1799 = vmul.f32 %v1295, %v1698
        %v1800 = vmul.f32 %v1296, %v1700
        %v1801 = vmul.f32 %v1297, %v1702
        %v1802 = vmul.f32 %v1298, %v1704
        %v1803 = vmul.f32 %v1299, %v1706
        %v1804 = vmul.f32 %v1300, %v1708
        %v1805 = vmul.f32 %v1301, %v1710
        %v1806 = vmul.f32 %v1302, %v1712
        %v1807 = vmul.f32 %v1303, %v1714
        %v1808 = vmul.f32 %v1304, %v1716
        %v1809 = vmul.f32 %v1305, %v1718
        %v1810 = vmul.f32 %v1306, %v1720
        %v1811 = vmul.f32 %v1307, %v1722
        %v1812 = vmul.f32 %v1308, %v1724
        %v1813 = vmul.f32 %v1309, %v1726
        %v1814 = vmul.f32 %v1310, %v1728
        %v1815 = vmul.f32 %v1311, %v1730
        %v1816 = vmul.f32 %v1312, %v1732
        %v1817 = vmul.f32 %v1313, %v1734
        %v1818 = vmul.f32 %v1314, %v1736
        %v1819 = vmul.f32 %v1315, %v1738
        %v1820 = vmul.f32 %v1316, %v1740
        %v1821 = vmul.f32 %v1317, %v1742
        %v1822 = vmul.f32 %v1318, %v1744
        %v1823 = vmul.f32 %v1319, %v1746
        %v1824 = vmul.f32 %v1320, %v1748
        %v1825 = vmul.f32 %v1321, %v1750
        %v1826 = vmul.f32 %v1322, %v1752
        %v1827 = vmul.f32 %v1323, %v1754
        %v1828 = vmul.f32 %v1324, %v1756
        %v1829 = vpack.c.bf16 %v1758, %v1757
        %v1830 = vpack.c.bf16 %v1760, %v1759
        %v1831 = vpack.c.bf16 %v1762, %v1761
        %v1832 = vpack.c.bf16 %v1764, %v1763
        %v1833 = vpack.c.bf16 %v1766, %v1765
        %v1834 = vpack.c.bf16 %v1768, %v1767
        %v1835 = vpack.c.bf16 %v1770, %v1769
        %v1836 = vpack.c.bf16 %v1772, %v1771
        %v1837 = vpack.c.bf16 %v1774, %v1773
        %v1838 = vpack.c.bf16 %v1776, %v1775
        %v1839 = vpack.c.bf16 %v1778, %v1777
        %v1840 = vpack.c.bf16 %v1780, %v1779
        %v1841 = vpack.c.bf16 %v1782, %v1781
        %v1842 = vpack.c.bf16 %v1784, %v1783
        %v1843 = vpack.c.bf16 %v1786, %v1785
        %v1844 = vpack.c.bf16 %v1788, %v1787
        %v1845 = vpack.c.bf16 %v1790, %v1789
        %v1846 = vpack.c.bf16 %v1792, %v1791
        %v1847 = vpack.c.bf16 %v1794, %v1793
        %v1848 = vpack.c.bf16 %v1796, %v1795
        %v1849 = vpack.c.bf16 %v1798, %v1797
        %v1850 = vpack.c.bf16 %v1800, %v1799
        %v1851 = vpack.c.bf16 %v1802, %v1801
        %v1852 = vpack.c.bf16 %v1804, %v1803
        %v1853 = vpack.c.bf16 %v1806, %v1805
        %v1854 = vpack.c.bf16 %v1808, %v1807
        %v1855 = vpack.c.bf16 %v1810, %v1809
        %v1856 = vpack.c.bf16 %v1812, %v1811
        %v1857 = vpack.c.bf16 %v1814, %v1813
        %v1858 = vpack.c.bf16 %v1816, %v1815
        %v1859 = vpack.c.bf16 %v1818, %v1817
        %v1860 = vpack.c.bf16 %v1820, %v1819
        %v1861 = vpack.c.bf16 %v1822, %v1821
        %v1862 = vpack.c.bf16 %v1824, %v1823
        %v1863 = vpack.c.bf16 %v1826, %v1825
        %v1864 = vpack.c.bf16 %v1828, %v1827
        %v1865 = vld [vmem:[#allocation13] sm:$0xf]
        %v1866 = vld [vmem:[#allocation13 + $0x4] sm:$0xf]
        %v1867 = vld [vmem:[#allocation13 + $0x8] sm:$0xf]
        %v1868 = vld [vmem:[#allocation13 + $0xc] sm:$0xf]
        %v1869 = vld [vmem:[#allocation13 + $0x10] sm:$0xf]
        %v1870 = vld [vmem:[#allocation13 + $0x14] sm:$0xf]
        %v1871 = vld [vmem:[#allocation13 + $0x18] sm:$0xf]
        %v1872 = vld [vmem:[#allocation13 + $0x1c] sm:$0xf]
        %v1873 = vld [vmem:[#allocation13 + $0x20] sm:$0xf]
        %v1874 = vld [vmem:[#allocation13 + $0x24] sm:$0xf]
        %v1875 = vld [vmem:[#allocation13 + $0x28] sm:$0xf]
        %v1876 = vld [vmem:[#allocation13 + $0x2c] sm:$0xf]
        %v1877 = vld [vmem:[#allocation13 + $0x30] sm:$0xf]
        %v1878 = vld [vmem:[#allocation13 + $0x34] sm:$0xf]
        %v1879 = vld [vmem:[#allocation13 + $0x38] sm:$0xf]
        %v1880 = vld [vmem:[#allocation13 + $0x3c] sm:$0xf]
        %v1881 = vld [vmem:[#allocation14] sm:$0x1]
        %v1883 = vlaneseq
        %v1884 = vshrl.u32 %v1883, 7
        %v1885 = vsub.s32 0, %v1884
        %v1886 = vrot.slane %v1881, %v1885
        %v1904 = vunpack.c.l.b16 %v1865
        %v1905 = vunpack.c.l.b16 %v1866
        %v1906 = vunpack.c.l.b16 %v1867
        %v1907 = vunpack.c.l.b16 %v1868
        %v1908 = vunpack.c.l.b16 %v1869
        %v1909 = vunpack.c.l.b16 %v1870
        %v1910 = vunpack.c.l.b16 %v1871
        %v1911 = vunpack.c.l.b16 %v1872
        %v1912 = vunpack.c.l.b16 %v1873
        %v1913 = vunpack.c.l.b16 %v1874
        %v1914 = vunpack.c.l.b16 %v1875
        %v1915 = vunpack.c.l.b16 %v1876
        %v1916 = vunpack.c.l.b16 %v1877
        %v1917 = vunpack.c.l.b16 %v1878
        %v1918 = vunpack.c.l.b16 %v1879
        %v1919 = vunpack.c.l.b16 %v1880
        %v1920 = vpack.c.b16 %v1905, %v1904
        %v1921 = vpack.c.b16 %v1907, %v1906
        %v1922 = vpack.c.b16 %v1909, %v1908
        %v1923 = vpack.c.b16 %v1911, %v1910
        %v1924 = vpack.c.b16 %v1913, %v1912
        %v1925 = vpack.c.b16 %v1915, %v1914
        %v1926 = vpack.c.b16 %v1917, %v1916
        %v1927 = vpack.c.b16 %v1919, %v1918
        %1936 = vmatprep.subr.bf16.mxu0 0
        %1937 = vmatpush1.bf16.msra.mxu0 %v1920
        %1938 = vmatprep.subr.bf16.mxu0 0
        %1939 = vmatpush1.bf16.msra.mxu0 %v1921
        %1940 = vmatprep.subr.bf16.mxu0 0
        %1941 = vmatpush1.bf16.msra.mxu0 %v1922
        %1942 = vmatprep.subr.bf16.mxu0 0
        %1943 = vmatpush1.bf16.msra.mxu0 %v1923
        %1944 = vmatprep.subr.bf16.mxu0 0
        %1945 = vmatpush1.bf16.msra.mxu0 %v1924
        %1946 = vmatprep.subr.bf16.mxu0 0
        %1947 = vmatpush1.bf16.msra.mxu0 %v1925
        %1948 = vmatprep.subr.bf16.mxu0 0
        %1949 = vmatpush1.bf16.msra.mxu0 %v1926
        %1950 = vmatprep.subr.bf16.mxu0 0
        %1951 = vmatpush1.bf16.msra.mxu0 %v1927
        %1952 = vmatprep.subr.bf16.mxu0 0
        %1953 = vmatpush1.bf16.msra.mxu0 0
        %1954 = vmatprep.subr.bf16.mxu0 0
        %1955 = vmatpush1.bf16.msra.mxu0 0
        %1956 = vmatprep.subr.bf16.mxu0 0
        %1957 = vmatpush1.bf16.msra.mxu0 0
        %1958 = vmatprep.subr.bf16.mxu0 0
        %1959 = vmatpush1.bf16.msra.mxu0 0
        %1960 = vmatprep.subr.bf16.mxu0 0
        %1961 = vmatpush1.bf16.msra.mxu0 0
        %1962 = vmatprep.subr.bf16.mxu0 0
        %1963 = vmatpush1.bf16.msra.mxu0 0
        %1964 = vmatprep.subr.bf16.mxu0 0
        %1965 = vmatpush1.bf16.msra.mxu0 0
        %1966 = vmatprep.subr.bf16.mxu0 0
        %1967 = vmatpush1.bf16.msra.mxu0 0
        %1968 = vmatprep.mubr.bf16.mxu0 0
        %1969 = vmatmul.mubr.bf16.gmra.mrb[0].mxu0 %v1829
        %v1970 = vpop.f32.mrb[0].mxu0
        %v1971 = vadd.f32 %v1886, %v1970
        %v1972 = vpop.f32.mrb[0].mxu0
        %v1973 = vpop.f32.mrb[0].mxu0
        %v1974 = vadd.f32 %v1886, %v1973
        %v1975 = vpop.f32.mrb[0].mxu0
        %1976 = vmatprep.mubr.bf16.mxu0 0
        %1977 = vmatmul.mubr.bf16.gmra.mrb[0].mxu0 %v1830
        %v1978 = vpop.f32.mrb[0].mxu0
        %v1979 = vadd.f32 %v1886, %v1978
        %v1980 = vpop.f32.mrb[0].mxu0
        %v1981 = vpop.f32.mrb[0].mxu0
        %v1982 = vadd.f32 %v1886, %v1981
        %v1983 = vpop.f32.mrb[0].mxu0
        %1984 = vmatprep.mubr.bf16.mxu0 0
        %1985 = vmatmul.mubr.bf16.gmra.mrb[0].mxu0 %v1831
        %v1986 = vpop.f32.mrb[0].mxu0
        %v1987 = vadd.f32 %v1886, %v1986
        %v1988 = vpop.f32.mrb[0].mxu0
        %v1989 = vpop.f32.mrb[0].mxu0
        %v1990 = vadd.f32 %v1886, %v1989
        %v1991 = vpop.f32.mrb[0].mxu0
        %1992 = vmatprep.mubr.bf16.mxu0 0
        %1993 = vmatmul.mubr.bf16.gmra.mrb[0].mxu0 %v1832
        %v1994 = vpop.f32.mrb[0].mxu0
        %v1995 = vadd.f32 %v1886, %v1994
        %v1996 = vpop.f32.mrb[0].mxu0
        %v1997 = vpop.f32.mrb[0].mxu0
        %v1998 = vadd.f32 %v1886, %v1997
        %v1999 = vpop.f32.mrb[0].mxu0
        %2000 = vmatprep.mubr.bf16.mxu0 0
        %2001 = vmatmul.mubr.bf16.gmra.mrb[0].mxu0 %v1833
        %v2002 = vpop.f32.mrb[0].mxu0
        %v2003 = vadd.f32 %v1886, %v2002
        %v2004 = vpop.f32.mrb[0].mxu0
        %v2005 = vpop.f32.mrb[0].mxu0
        %v2006 = vadd.f32 %v1886, %v2005
        %v2007 = vpop.f32.mrb[0].mxu0
        %2008 = vmatprep.mubr.bf16.mxu0 0
        %2009 = vmatmul.mubr.bf16.gmra.mrb[0].mxu0 %v1834
        %v2010 = vpop.f32.mrb[0].mxu0
        %v2011 = vadd.f32 %v1886, %v2010
        %v2012 = vpop.f32.mrb[0].mxu0
        %v2013 = vpop.f32.mrb[0].mxu0
        %v2014 = vadd.f32 %v1886, %v2013
        %v2015 = vpop.f32.mrb[0].mxu0
        %2016 = vmatprep.mubr.bf16.mxu0 0
        %2017 = vmatmul.mubr.bf16.gmra.mrb[0].mxu0 %v1835
        %v2018 = vpop.f32.mrb[0].mxu0
        %v2019 = vadd.f32 %v1886, %v2018
        %v2020 = vpop.f32.mrb[0].mxu0
        %v2021 = vpop.f32.mrb[0].mxu0
        %v2022 = vadd.f32 %v1886, %v2021
        %v2023 = vpop.f32.mrb[0].mxu0
        %2024 = vmatprep.mubr.bf16.mxu0 0
        %2025 = vmatmul.mubr.bf16.gmra.mrb[0].mxu0 %v1836
        %v2026 = vpop.f32.mrb[0].mxu0
        %v2027 = vadd.f32 %v1886, %v2026
        %v2028 = vpop.f32.mrb[0].mxu0
        %v2029 = vpop.f32.mrb[0].mxu0
        %v2030 = vadd.f32 %v1886, %v2029
        %v2031 = vpop.f32.mrb[0].mxu0
        %2032 = vmatprep.mubr.bf16.mxu0 0
        %2033 = vmatmul.mubr.bf16.gmra.mrb[0].mxu0 %v1837
        %v2034 = vpop.f32.mrb[0].mxu0
        %v2035 = vadd.f32 %v1886, %v2034
        %v2036 = vpop.f32.mrb[0].mxu0
        %v2037 = vpop.f32.mrb[0].mxu0
        %v2038 = vadd.f32 %v1886, %v2037
        %v2039 = vpop.f32.mrb[0].mxu0
        %2040 = vmatprep.mubr.bf16.mxu0 0
        %2041 = vmatmul.mubr.bf16.gmra.mrb[0].mxu0 %v1838
        %v2042 = vpop.f32.mrb[0].mxu0
        %v2043 = vadd.f32 %v1886, %v2042
        %v2044 = vpop.f32.mrb[0].mxu0
        %v2045 = vpop.f32.mrb[0].mxu0
        %v2046 = vadd.f32 %v1886, %v2045
        %v2047 = vpop.f32.mrb[0].mxu0
        %2048 = vmatprep.mubr.bf16.mxu0 0
        %2049 = vmatmul.mubr.bf16.gmra.mrb[0].mxu0 %v1839
        %v2050 = vpop.f32.mrb[0].mxu0
        %v2051 = vadd.f32 %v1886, %v2050
        %v2052 = vpop.f32.mrb[0].mxu0
        %v2053 = vpop.f32.mrb[0].mxu0
        %v2054 = vadd.f32 %v1886, %v2053
        %v2055 = vpop.f32.mrb[0].mxu0
        %2056 = vmatprep.mubr.bf16.mxu0 0
        %2057 = vmatmul.mubr.bf16.gmra.mrb[0].mxu0 %v1840
        %v2058 = vpop.f32.mrb[0].mxu0
        %v2059 = vadd.f32 %v1886, %v2058
        %v2060 = vpop.f32.mrb[0].mxu0
        %v2061 = vpop.f32.mrb[0].mxu0
        %v2062 = vadd.f32 %v1886, %v2061
        %v2063 = vpop.f32.mrb[0].mxu0
        %2064 = vmatprep.mubr.bf16.mxu0 0
        %2065 = vmatmul.mubr.bf16.gmra.mrb[0].mxu0 %v1841
        %v2066 = vpop.f32.mrb[0].mxu0
        %v2067 = vadd.f32 %v1886, %v2066
        %v2068 = vpop.f32.mrb[0].mxu0
        %v2069 = vpop.f32.mrb[0].mxu0
        %v2070 = vadd.f32 %v1886, %v2069
        %v2071 = vpop.f32.mrb[0].mxu0
        %2072 = vmatprep.mubr.bf16.mxu0 0
        %2073 = vmatmul.mubr.bf16.gmra.mrb[0].mxu0 %v1842
        %v2074 = vpop.f32.mrb[0].mxu0
        %v2075 = vadd.f32 %v1886, %v2074
        %v2076 = vpop.f32.mrb[0].mxu0
        %v2077 = vpop.f32.mrb[0].mxu0
        %v2078 = vadd.f32 %v1886, %v2077
        %v2079 = vpop.f32.mrb[0].mxu0
        %2080 = vmatprep.mubr.bf16.mxu0 0
        %2081 = vmatmul.mubr.bf16.gmra.mrb[0].mxu0 %v1843
        %v2082 = vpop.f32.mrb[0].mxu0
        %v2083 = vadd.f32 %v1886, %v2082
        %v2084 = vpop.f32.mrb[0].mxu0
        %v2085 = vpop.f32.mrb[0].mxu0
        %v2086 = vadd.f32 %v1886, %v2085
        %v2087 = vpop.f32.mrb[0].mxu0
        %2088 = vmatprep.mubr.bf16.mxu0 0
        %2089 = vmatmul.mubr.bf16.gmra.mrb[0].mxu0 %v1844
        %v2090 = vpop.f32.mrb[0].mxu0
        %v2091 = vadd.f32 %v1886, %v2090
        %v2092 = vpop.f32.mrb[0].mxu0
        %v2093 = vpop.f32.mrb[0].mxu0
        %v2094 = vadd.f32 %v1886, %v2093
        %v2095 = vpop.f32.mrb[0].mxu0
        %2096 = vmatprep.mubr.bf16.mxu0 0
        %2097 = vmatmul.mubr.bf16.gmra.mrb[0].mxu0 %v1845
        %v2098 = vpop.f32.mrb[0].mxu0
        %v2099 = vadd.f32 %v1886, %v2098
        %v2100 = vpop.f32.mrb[0].mxu0
        %v2101 = vpop.f32.mrb[0].mxu0
        %v2102 = vadd.f32 %v1886, %v2101
        %v2103 = vpop.f32.mrb[0].mxu0
        %2104 = vmatprep.mubr.bf16.mxu0 0
        %2105 = vmatmul.mubr.bf16.gmra.mrb[0].mxu0 %v1846
        %v2106 = vpop.f32.mrb[0].mxu0
        %v2107 = vadd.f32 %v1886, %v2106
        %v2108 = vpop.f32.mrb[0].mxu0
        %v2109 = vpop.f32.mrb[0].mxu0
        %v2110 = vadd.f32 %v1886, %v2109
        %v2111 = vpop.f32.mrb[0].mxu0
        %2112 = vmatprep.mubr.bf16.mxu0 0
        %2113 = vmatmul.mubr.bf16.gmra.mrb[0].mxu0 %v1847
        %v2114 = vpop.f32.mrb[0].mxu0
        %v2115 = vadd.f32 %v1886, %v2114
        %v2116 = vpop.f32.mrb[0].mxu0
        %v2117 = vpop.f32.mrb[0].mxu0
        %v2118 = vadd.f32 %v1886, %v2117
        %v2119 = vpop.f32.mrb[0].mxu0
        %2120 = vmatprep.mubr.bf16.mxu0 0
        %2121 = vmatmul.mubr.bf16.gmra.mrb[0].mxu0 %v1848
        %v2122 = vpop.f32.mrb[0].mxu0
        %v2123 = vadd.f32 %v1886, %v2122
        %v2124 = vpop.f32.mrb[0].mxu0
        %v2125 = vpop.f32.mrb[0].mxu0
        %v2126 = vadd.f32 %v1886, %v2125
        %v2127 = vpop.f32.mrb[0].mxu0
        %2128 = vmatprep.mubr.bf16.mxu0 0
        %2129 = vmatmul.mubr.bf16.gmra.mrb[0].mxu0 %v1849
        %v2130 = vpop.f32.mrb[0].mxu0
        %v2131 = vadd.f32 %v1886, %v2130
        %v2132 = vpop.f32.mrb[0].mxu0
        %v2133 = vpop.f32.mrb[0].mxu0
        %v2134 = vadd.f32 %v1886, %v2133
        %v2135 = vpop.f32.mrb[0].mxu0
        %2136 = vmatprep.mubr.bf16.mxu0 0
        %2137 = vmatmul.mubr.bf16.gmra.mrb[0].mxu0 %v1850
        %v2138 = vpop.f32.mrb[0].mxu0
        %v2139 = vadd.f32 %v1886, %v2138
        %v2140 = vpop.f32.mrb[0].mxu0
        %v2141 = vpop.f32.mrb[0].mxu0
        %v2142 = vadd.f32 %v1886, %v2141
        %v2143 = vpop.f32.mrb[0].mxu0
        %2144 = vmatprep.mubr.bf16.mxu0 0
        %2145 = vmatmul.mubr.bf16.gmra.mrb[0].mxu0 %v1851
        %v2146 = vpop.f32.mrb[0].mxu0
        %v2147 = vadd.f32 %v1886, %v2146
        %v2148 = vpop.f32.mrb[0].mxu0
        %v2149 = vpop.f32.mrb[0].mxu0
        %v2150 = vadd.f32 %v1886, %v2149
        %v2151 = vpop.f32.mrb[0].mxu0
        %2152 = vmatprep.mubr.bf16.mxu0 0
        %2153 = vmatmul.mubr.bf16.gmra.mrb[0].mxu0 %v1852
        %v2154 = vpop.f32.mrb[0].mxu0
        %v2155 = vadd.f32 %v1886, %v2154
        %v2156 = vpop.f32.mrb[0].mxu0
        %v2157 = vpop.f32.mrb[0].mxu0
        %v2158 = vadd.f32 %v1886, %v2157
        %v2159 = vpop.f32.mrb[0].mxu0
        %2160 = vmatprep.mubr.bf16.mxu0 0
        %2161 = vmatmul.mubr.bf16.gmra.mrb[0].mxu0 %v1853
        %v2162 = vpop.f32.mrb[0].mxu0
        %v2163 = vadd.f32 %v1886, %v2162
        %v2164 = vpop.f32.mrb[0].mxu0
        %v2165 = vpop.f32.mrb[0].mxu0
        %v2166 = vadd.f32 %v1886, %v2165
        %v2167 = vpop.f32.mrb[0].mxu0
        %2168 = vmatprep.mubr.bf16.mxu0 0
        %2169 = vmatmul.mubr.bf16.gmra.mrb[0].mxu0 %v1854
        %v2170 = vpop.f32.mrb[0].mxu0
        %v2171 = vadd.f32 %v1886, %v2170
        %v2172 = vpop.f32.mrb[0].mxu0
        %v2173 = vpop.f32.mrb[0].mxu0
        %v2174 = vadd.f32 %v1886, %v2173
        %v2175 = vpop.f32.mrb[0].mxu0
        %2176 = vmatprep.mubr.bf16.mxu0 0
        %2177 = vmatmul.mubr.bf16.gmra.mrb[0].mxu0 %v1855
        %v2178 = vpop.f32.mrb[0].mxu0
        %v2179 = vadd.f32 %v1886, %v2178
        %v2180 = vpop.f32.mrb[0].mxu0
        %v2181 = vpop.f32.mrb[0].mxu0
        %v2182 = vadd.f32 %v1886, %v2181
        %v2183 = vpop.f32.mrb[0].mxu0
        %2184 = vmatprep.mubr.bf16.mxu0 0
        %2185 = vmatmul.mubr.bf16.gmra.mrb[0].mxu0 %v1856
        %v2186 = vpop.f32.mrb[0].mxu0
        %v2187 = vadd.f32 %v1886, %v2186
        %v2188 = vpop.f32.mrb[0].mxu0
        %v2189 = vpop.f32.mrb[0].mxu0
        %v2190 = vadd.f32 %v1886, %v2189
        %v2191 = vpop.f32.mrb[0].mxu0
        %2192 = vmatprep.mubr.bf16.mxu0 0
        %2193 = vmatmul.mubr.bf16.gmra.mrb[0].mxu0 %v1857
        %v2194 = vpop.f32.mrb[0].mxu0
        %v2195 = vadd.f32 %v1886, %v2194
        %v2196 = vpop.f32.mrb[0].mxu0
        %v2197 = vpop.f32.mrb[0].mxu0
        %v2198 = vadd.f32 %v1886, %v2197
        %v2199 = vpop.f32.mrb[0].mxu0
        %2200 = vmatprep.mubr.bf16.mxu0 0
        %2201 = vmatmul.mubr.bf16.gmra.mrb[0].mxu0 %v1858
        %v2202 = vpop.f32.mrb[0].mxu0
        %v2203 = vadd.f32 %v1886, %v2202
        %v2204 = vpop.f32.mrb[0].mxu0
        %v2205 = vpop.f32.mrb[0].mxu0
        %v2206 = vadd.f32 %v1886, %v2205
        %v2207 = vpop.f32.mrb[0].mxu0
        %2208 = vmatprep.mubr.bf16.mxu0 0
        %2209 = vmatmul.mubr.bf16.gmra.mrb[0].mxu0 %v1859
        %v2210 = vpop.f32.mrb[0].mxu0
        %v2211 = vadd.f32 %v1886, %v2210
        %v2212 = vpop.f32.mrb[0].mxu0
        %v2213 = vpop.f32.mrb[0].mxu0
        %v2214 = vadd.f32 %v1886, %v2213
        %v2215 = vpop.f32.mrb[0].mxu0
        %2216 = vmatprep.mubr.bf16.mxu0 0
        %2217 = vmatmul.mubr.bf16.gmra.mrb[0].mxu0 %v1860
        %v2218 = vpop.f32.mrb[0].mxu0
        %v2219 = vadd.f32 %v1886, %v2218
        %v2220 = vpop.f32.mrb[0].mxu0
        %v2221 = vpop.f32.mrb[0].mxu0
        %v2222 = vadd.f32 %v1886, %v2221
        %v2223 = vpop.f32.mrb[0].mxu0
        %2224 = vmatprep.mubr.bf16.mxu0 0
        %2225 = vmatmul.mubr.bf16.gmra.mrb[0].mxu0 %v1861
        %v2226 = vpop.f32.mrb[0].mxu0
        %v2227 = vadd.f32 %v1886, %v2226
        %v2228 = vpop.f32.mrb[0].mxu0
        %v2229 = vpop.f32.mrb[0].mxu0
        %v2230 = vadd.f32 %v1886, %v2229
        %v2231 = vpop.f32.mrb[0].mxu0
        %2232 = vmatprep.mubr.bf16.mxu0 0
        %2233 = vmatmul.mubr.bf16.gmra.mrb[0].mxu0 %v1862
        %v2234 = vpop.f32.mrb[0].mxu0
        %v2235 = vadd.f32 %v1886, %v2234
        %v2236 = vpop.f32.mrb[0].mxu0
        %v2237 = vpop.f32.mrb[0].mxu0
        %v2238 = vadd.f32 %v1886, %v2237
        %v2239 = vpop.f32.mrb[0].mxu0
        %2240 = vmatprep.mubr.bf16.mxu0 0
        %2241 = vmatmul.mubr.bf16.gmra.mrb[0].mxu0 %v1863
        %v2242 = vpop.f32.mrb[0].mxu0
        %v2243 = vadd.f32 %v1886, %v2242
        %v2244 = vpop.f32.mrb[0].mxu0
        %v2245 = vpop.f32.mrb[0].mxu0
        %v2246 = vadd.f32 %v1886, %v2245
        %v2247 = vpop.f32.mrb[0].mxu0
        %2248 = vmatprep.mubr.bf16.mxu0 0
        %2249 = vmatmul.mubr.bf16.gmra.mrb[0].mxu0 %v1864
        %v2250 = vpop.f32.mrb[0].mxu0
        %v2251 = vadd.f32 %v1886, %v2250
        %v2252 = vpop.f32.mrb[0].mxu0
        %v2253 = vpop.f32.mrb[0].mxu0
        %v2254 = vadd.f32 %v1886, %v2253
        %v2255 = vpop.f32.mrb[0].mxu0
        %2256 = vdwg.mxu0
        %v2257 = vpack.c.bf16 %v1974, %v1971
        %v2258 = vpack.c.bf16 %v1982, %v1979
        %v2259 = vpack.c.bf16 %v1990, %v1987
        %v2260 = vpack.c.bf16 %v1998, %v1995
        %v2261 = vpack.c.bf16 %v2006, %v2003
        %v2262 = vpack.c.bf16 %v2014, %v2011
        %v2263 = vpack.c.bf16 %v2022, %v2019
        %v2264 = vpack.c.bf16 %v2030, %v2027
        %v2265 = vpack.c.bf16 %v2038, %v2035
        %v2266 = vpack.c.bf16 %v2046, %v2043
        %v2267 = vpack.c.bf16 %v2054, %v2051
        %v2268 = vpack.c.bf16 %v2062, %v2059
        %v2269 = vpack.c.bf16 %v2070, %v2067
        %v2270 = vpack.c.bf16 %v2078, %v2075
        %v2271 = vpack.c.bf16 %v2086, %v2083
        %v2272 = vpack.c.bf16 %v2094, %v2091
        %v2273 = vpack.c.bf16 %v2102, %v2099
        %v2274 = vpack.c.bf16 %v2110, %v2107
        %v2275 = vpack.c.bf16 %v2118, %v2115
        %v2276 = vpack.c.bf16 %v2126, %v2123
        %v2277 = vpack.c.bf16 %v2134, %v2131
        %v2278 = vpack.c.bf16 %v2142, %v2139
        %v2279 = vpack.c.bf16 %v2150, %v2147
        %v2280 = vpack.c.bf16 %v2158, %v2155
        %v2281 = vpack.c.bf16 %v2166, %v2163
        %v2282 = vpack.c.bf16 %v2174, %v2171
        %v2283 = vpack.c.bf16 %v2182, %v2179
        %v2284 = vpack.c.bf16 %v2190, %v2187
        %v2285 = vpack.c.bf16 %v2198, %v2195
        %v2286 = vpack.c.bf16 %v2206, %v2203
        %v2287 = vpack.c.bf16 %v2214, %v2211
        %v2288 = vpack.c.bf16 %v2222, %v2219
        %v2289 = vpack.c.bf16 %v2230, %v2227
        %v2290 = vpack.c.bf16 %v2238, %v2235
        %v2291 = vpack.c.bf16 %v2246, %v2243
        %v2292 = vpack.c.bf16 %v2254, %v2251
        %v2329 = vunpack.c.l.b16 %v2257
        %v2330 = vunpack.c.h.b16 %v2257
        %v2331 = vunpack.c.l.b16 %v2258
        %v2332 = vunpack.c.h.b16 %v2258
        %v2333 = vunpack.c.l.b16 %v2259
        %v2334 = vunpack.c.h.b16 %v2259
        %v2335 = vunpack.c.l.b16 %v2260
        %v2336 = vunpack.c.h.b16 %v2260
        %v2337 = vunpack.c.l.b16 %v2261
        %v2338 = vunpack.c.h.b16 %v2261
        %v2339 = vunpack.c.l.b16 %v2262
        %v2340 = vunpack.c.h.b16 %v2262
        %v2341 = vunpack.c.l.b16 %v2263
        %v2342 = vunpack.c.h.b16 %v2263
        %v2343 = vunpack.c.l.b16 %v2264
        %v2344 = vunpack.c.h.b16 %v2264
        %v2345 = vunpack.c.l.b16 %v2265
        %v2346 = vunpack.c.h.b16 %v2265
        %v2347 = vunpack.c.l.b16 %v2266
        %v2348 = vunpack.c.h.b16 %v2266
        %v2349 = vunpack.c.l.b16 %v2267
        %v2350 = vunpack.c.h.b16 %v2267
        %v2351 = vunpack.c.l.b16 %v2268
        %v2352 = vunpack.c.h.b16 %v2268
        %v2353 = vunpack.c.l.b16 %v2269
        %v2354 = vunpack.c.h.b16 %v2269
        %v2355 = vunpack.c.l.b16 %v2270
        %v2356 = vunpack.c.h.b16 %v2270
        %v2357 = vunpack.c.l.b16 %v2271
        %v2358 = vunpack.c.h.b16 %v2271
        %v2359 = vunpack.c.l.b16 %v2272
        %v2360 = vunpack.c.h.b16 %v2272
        %v2361 = vunpack.c.l.b16 %v2273
        %v2362 = vunpack.c.h.b16 %v2273
        %v2363 = vunpack.c.l.b16 %v2274
        %v2364 = vunpack.c.h.b16 %v2274
        %v2365 = vunpack.c.l.b16 %v2275
        %v2366 = vunpack.c.h.b16 %v2275
        %v2367 = vunpack.c.l.b16 %v2276
        %v2368 = vunpack.c.h.b16 %v2276
        %v2369 = vunpack.c.l.b16 %v2277
        %v2370 = vunpack.c.h.b16 %v2277
        %v2371 = vunpack.c.l.b16 %v2278
        %v2372 = vunpack.c.h.b16 %v2278
        %v2373 = vunpack.c.l.b16 %v2279
        %v2374 = vunpack.c.h.b16 %v2279
        %v2375 = vunpack.c.l.b16 %v2280
        %v2376 = vunpack.c.h.b16 %v2280
        %v2377 = vunpack.c.l.b16 %v2281
        %v2378 = vunpack.c.h.b16 %v2281
        %v2379 = vunpack.c.l.b16 %v2282
        %v2380 = vunpack.c.h.b16 %v2282
        %v2381 = vunpack.c.l.b16 %v2283
        %v2382 = vunpack.c.h.b16 %v2283
        %v2383 = vunpack.c.l.b16 %v2284
        %v2384 = vunpack.c.h.b16 %v2284
        %v2385 = vunpack.c.l.b16 %v2285
        %v2386 = vunpack.c.h.b16 %v2285
        %v2387 = vunpack.c.l.b16 %v2286
        %v2388 = vunpack.c.h.b16 %v2286
        %v2389 = vunpack.c.l.b16 %v2287
        %v2390 = vunpack.c.h.b16 %v2287
        %v2391 = vunpack.c.l.b16 %v2288
        %v2392 = vunpack.c.h.b16 %v2288
        %v2393 = vunpack.c.l.b16 %v2289
        %v2394 = vunpack.c.h.b16 %v2289
        %v2395 = vunpack.c.l.b16 %v2290
        %v2396 = vunpack.c.h.b16 %v2290
        %v2397 = vunpack.c.l.b16 %v2291
        %v2398 = vunpack.c.h.b16 %v2291
        %v2399 = vunpack.c.l.b16 %v2292
        %v2400 = vunpack.c.h.b16 %v2292
        %v2401 = vpack.c.b16 %v2329, %v2329
        %v2402 = vpack.c.b16 %v2330, %v2330
        %v2403 = vpack.c.b16 %v2331, %v2331
        %v2404 = vpack.c.b16 %v2332, %v2332
        %v2405 = vpack.c.b16 %v2333, %v2333
        %v2406 = vpack.c.b16 %v2334, %v2334
        %v2407 = vpack.c.b16 %v2335, %v2335
        %v2408 = vpack.c.b16 %v2336, %v2336
        %v2409 = vpack.c.b16 %v2337, %v2337
        %v2410 = vpack.c.b16 %v2338, %v2338
        %v2411 = vpack.c.b16 %v2339, %v2339
        %v2412 = vpack.c.b16 %v2340, %v2340
        %v2413 = vpack.c.b16 %v2341, %v2341
        %v2414 = vpack.c.b16 %v2342, %v2342
        %v2415 = vpack.c.b16 %v2343, %v2343
        %v2416 = vpack.c.b16 %v2344, %v2344
        %v2417 = vpack.c.b16 %v2345, %v2345
        %v2418 = vpack.c.b16 %v2346, %v2346
        %v2419 = vpack.c.b16 %v2347, %v2347
        %v2420 = vpack.c.b16 %v2348, %v2348
        %v2421 = vpack.c.b16 %v2349, %v2349
        %v2422 = vpack.c.b16 %v2350, %v2350
        %v2423 = vpack.c.b16 %v2351, %v2351
        %v2424 = vpack.c.b16 %v2352, %v2352
        %v2425 = vpack.c.b16 %v2353, %v2353
        %v2426 = vpack.c.b16 %v2354, %v2354
        %v2427 = vpack.c.b16 %v2355, %v2355
        %v2428 = vpack.c.b16 %v2356, %v2356
        %v2429 = vpack.c.b16 %v2357, %v2357
        %v2430 = vpack.c.b16 %v2358, %v2358
        %v2431 = vpack.c.b16 %v2359, %v2359
        %v2432 = vpack.c.b16 %v2360, %v2360
        %v2433 = vpack.c.b16 %v2361, %v2361
        %v2434 = vpack.c.b16 %v2362, %v2362
        %v2435 = vpack.c.b16 %v2363, %v2363
        %v2436 = vpack.c.b16 %v2364, %v2364
        %v2437 = vpack.c.b16 %v2365, %v2365
        %v2438 = vpack.c.b16 %v2366, %v2366
        %v2439 = vpack.c.b16 %v2367, %v2367
        %v2440 = vpack.c.b16 %v2368, %v2368
        %v2441 = vpack.c.b16 %v2369, %v2369
        %v2442 = vpack.c.b16 %v2370, %v2370
        %v2443 = vpack.c.b16 %v2371, %v2371
        %v2444 = vpack.c.b16 %v2372, %v2372
        %v2445 = vpack.c.b16 %v2373, %v2373
        %v2446 = vpack.c.b16 %v2374, %v2374
        %v2447 = vpack.c.b16 %v2375, %v2375
        %v2448 = vpack.c.b16 %v2376, %v2376
        %v2449 = vpack.c.b16 %v2377, %v2377
        %v2450 = vpack.c.b16 %v2378, %v2378
        %v2451 = vpack.c.b16 %v2379, %v2379
        %v2452 = vpack.c.b16 %v2380, %v2380
        %v2453 = vpack.c.b16 %v2381, %v2381
        %v2454 = vpack.c.b16 %v2382, %v2382
        %v2455 = vpack.c.b16 %v2383, %v2383
        %v2456 = vpack.c.b16 %v2384, %v2384
        %v2457 = vpack.c.b16 %v2385, %v2385
        %v2458 = vpack.c.b16 %v2386, %v2386
        %v2459 = vpack.c.b16 %v2387, %v2387
        %v2460 = vpack.c.b16 %v2388, %v2388
        %v2461 = vpack.c.b16 %v2389, %v2389
        %v2462 = vpack.c.b16 %v2390, %v2390
        %v2463 = vpack.c.b16 %v2391, %v2391
        %v2464 = vpack.c.b16 %v2392, %v2392
        %v2465 = vpack.c.b16 %v2393, %v2393
        %v2466 = vpack.c.b16 %v2394, %v2394
        %v2467 = vpack.c.b16 %v2395, %v2395
        %v2468 = vpack.c.b16 %v2396, %v2396
        %v2469 = vpack.c.b16 %v2397, %v2397
        %v2470 = vpack.c.b16 %v2398, %v2398
        %v2471 = vpack.c.b16 %v2399, %v2399
        %v2472 = vpack.c.b16 %v2400, %v2400
        %2545 = vst [vmem:[%s434] sm:$0xf] %v2401
        %2546 = vst [vmem:[%s434 + $0x4] sm:$0xf] %v2402
        %2547 = vst [vmem:[%s434 + $0x8] sm:$0xf] %v2403
        %2548 = vst [vmem:[%s434 + $0xc] sm:$0xf] %v2404
        %2549 = vst [vmem:[%s434 + $0x10] sm:$0xf] %v2405
        %2550 = vst [vmem:[%s434 + $0x14] sm:$0xf] %v2406
        %2551 = vst [vmem:[%s434 + $0x18] sm:$0xf] %v2407
        %2552 = vst [vmem:[%s434 + $0x1c] sm:$0xf] %v2408
        %2553 = vst [vmem:[%s434 + $0x20] sm:$0xf] %v2409
        %2554 = vst [vmem:[%s434 + $0x24] sm:$0xf] %v2410
        %2555 = vst [vmem:[%s434 + $0x28] sm:$0xf] %v2411
        %2556 = vst [vmem:[%s434 + $0x2c] sm:$0xf] %v2412
        %2557 = vst [vmem:[%s434 + $0x30] sm:$0xf] %v2413
        %2558 = vst [vmem:[%s434 + $0x34] sm:$0xf] %v2414
        %2559 = vst [vmem:[%s434 + $0x38] sm:$0xf] %v2415
        %2560 = vst [vmem:[%s434 + $0x3c] sm:$0xf] %v2416
        %2561 = vst [vmem:[%s434 + $0x40] sm:$0xf] %v2417
        %2562 = vst [vmem:[%s434 + $0x44] sm:$0xf] %v2418
        %2563 = vst [vmem:[%s434 + $0x48] sm:$0xf] %v2419
        %2564 = vst [vmem:[%s434 + $0x4c] sm:$0xf] %v2420
        %2565 = vst [vmem:[%s434 + $0x50] sm:$0xf] %v2421
        %2566 = vst [vmem:[%s434 + $0x54] sm:$0xf] %v2422
        %2567 = vst [vmem:[%s434 + $0x58] sm:$0xf] %v2423
        %2568 = vst [vmem:[%s434 + $0x5c] sm:$0xf] %v2424
        %2569 = vst [vmem:[%s434 + $0x60] sm:$0xf] %v2425
        %2570 = vst [vmem:[%s434 + $0x64] sm:$0xf] %v2426
        %2571 = vst [vmem:[%s434 + $0x68] sm:$0xf] %v2427
        %2572 = vst [vmem:[%s434 + $0x6c] sm:$0xf] %v2428
        %2573 = vst [vmem:[%s434 + $0x70] sm:$0xf] %v2429
        %2574 = vst [vmem:[%s434 + $0x74] sm:$0xf] %v2430
        %2575 = vst [vmem:[%s434 + $0x78] sm:$0xf] %v2431
        %2576 = vst [vmem:[%s434 + $0x7c] sm:$0xf] %v2432
        %2577 = vst [vmem:[%s434 + $0x80] sm:$0xf] %v2433
        %2578 = vst [vmem:[%s434 + $0x84] sm:$0xf] %v2434
        %2579 = vst [vmem:[%s434 + $0x88] sm:$0xf] %v2435
        %2580 = vst [vmem:[%s434 + $0x8c] sm:$0xf] %v2436
        %2581 = vst [vmem:[%s434 + $0x90] sm:$0xf] %v2437
        %2582 = vst [vmem:[%s434 + $0x94] sm:$0xf] %v2438
        %2583 = vst [vmem:[%s434 + $0x98] sm:$0xf] %v2439
        %2584 = vst [vmem:[%s434 + $0x9c] sm:$0xf] %v2440
        %2585 = vst [vmem:[%s434 + $0xa0] sm:$0xf] %v2441
        %2586 = vst [vmem:[%s434 + $0xa4] sm:$0xf] %v2442
        %2587 = vst [vmem:[%s434 + $0xa8] sm:$0xf] %v2443
        %2588 = vst [vmem:[%s434 + $0xac] sm:$0xf] %v2444
        %2589 = vst [vmem:[%s434 + $0xb0] sm:$0xf] %v2445
        %2590 = vst [vmem:[%s434 + $0xb4] sm:$0xf] %v2446
        %2591 = vst [vmem:[%s434 + $0xb8] sm:$0xf] %v2447
        %2592 = vst [vmem:[%s434 + $0xbc] sm:$0xf] %v2448
        %2593 = vst [vmem:[%s434 + $0xc0] sm:$0xf] %v2449
        %2594 = vst [vmem:[%s434 + $0xc4] sm:$0xf] %v2450
        %2595 = vst [vmem:[%s434 + $0xc8] sm:$0xf] %v2451
        %2596 = vst [vmem:[%s434 + $0xcc] sm:$0xf] %v2452
        %2597 = vst [vmem:[%s434 + $0xd0] sm:$0xf] %v2453
        %2598 = vst [vmem:[%s434 + $0xd4] sm:$0xf] %v2454
        %2599 = vst [vmem:[%s434 + $0xd8] sm:$0xf] %v2455
        %2600 = vst [vmem:[%s434 + $0xdc] sm:$0xf] %v2456
        %2601 = vst [vmem:[%s434 + $0xe0] sm:$0xf] %v2457
        %2602 = vst [vmem:[%s434 + $0xe4] sm:$0xf] %v2458
        %2603 = vst [vmem:[%s434 + $0xe8] sm:$0xf] %v2459
        %2604 = vst [vmem:[%s434 + $0xec] sm:$0xf] %v2460
        %2605 = vst [vmem:[%s434 + $0xf0] sm:$0xf] %v2461
        %2606 = vst [vmem:[%s434 + $0xf4] sm:$0xf] %v2462
        %2607 = vst [vmem:[%s434 + $0xf8] sm:$0xf] %v2463
        %2608 = vst [vmem:[%s434 + $0xfc] sm:$0xf] %v2464
        %2609 = vst [vmem:[%s434 + $0x100] sm:$0xf] %v2465
        %2610 = vst [vmem:[%s434 + $0x104] sm:$0xf] %v2466
        %2611 = vst [vmem:[%s434 + $0x108] sm:$0xf] %v2467
        %2612 = vst [vmem:[%s434 + $0x10c] sm:$0xf] %v2468
        %2613 = vst [vmem:[%s434 + $0x110] sm:$0xf] %v2469
        %2614 = vst [vmem:[%s434 + $0x114] sm:$0xf] %v2470
        %2615 = vst [vmem:[%s434 + $0x118] sm:$0xf] %v2471
        %2616 = vst [vmem:[%s434 + $0x11c] sm:$0xf] %v2472
        %s2617 = sand.u32 %s226, 1
        %s2618 = scalar_lea.sflag [#allocation4], %s2617
        %s2619 = sand.u32 %s226, 1
        %s2620 = smul.addr %s2619, 288
        %s2621 = scalar_lea.vmem [#allocation16], %s2620
        // Predicated region
        $region85: #{tpu_custom_call.1} parent=51 // pred_check
          %p2622 = pneg %p236
        $region86: #{tpu_custom_call.1} parent=51 // pred_check_branch
          %2624 = sbr.rel (%p2622) target = $region88
        $region87: #{tpu_custom_call.1} parent=51 // pred_region
          %s2625 = sadd.s32 %s33, %s34
          %s2626 = smul.u32 72, %s2625
          %s2628 = ssub.s32 4608, 4608
          %2629 = vsyncadd %s2618, %s2628
          %s2630 = smul.addr %s2626, 64
          %s2631 = scalar_lea.hbm %s8, %s2630
          %s2632 = sshll.u32 %s2621, 4
          %s2633 = int_to_ptr.vmem [resolvable:$true] %s2632
          %2638 = dma.vmem_to_hbm [thread:$0]  %s2633, 4608, %s2631, %s2618, 64, 64, 4
        $region88: #{tpu_custom_call.1} parent=51 // pred_fallthru
          _
      $region52: #{tpu_custom_call.1} parent=5 // pred_fallthru
        _
      %p2639 = scmp.le.s32.totalorder 2, %s24
      // Predicated region
      $region89: #{tpu_custom_call.1} parent=5 // pred_check
        %p2640 = pneg %p2639
      $region90: #{tpu_custom_call.1} parent=5 // pred_check_branch
        %2642 = sbr.rel (%p2640) target = $region92
      $region91: #{tpu_custom_call.1} parent=5 // pred_region
        %s2643 = ssub.s32 %s24, 2
        // Predicated region
        $region93: #{tpu_custom_call.1} parent=91 // pred_check
          %p2644 = pneg %p242
        $region94: #{tpu_custom_call.1} parent=91 // pred_check_branch
          %2646 = sbr.rel (%p2644) target = $region96
        $region95: #{tpu_custom_call.1} parent=91 // pred_region
          %s2647 = sand.u32 %s227, 1
          %s2648 = scalar_lea.sflag [#allocation4], %s2647
          %s2649 = sand.u32 %s227, 1
          %s2650 = smul.addr %s2649, 288
          %s2651 = scalar_lea.vmem [#allocation16], %s2650
          %2652 = dma.done %s2648, 4608
        $region96: #{tpu_custom_call.1} parent=91 // pred_fallthru
          _
      $region92: #{tpu_custom_call.1} parent=5 // pred_fallthru
        _
    $region6: #{tpu_custom_call.1} parent=1 // loop_footer
      %s28 = sadd.s32 1, %s24
    $region7: #{tpu_custom_call.1} parent=1 // loop_footer_branch
      %23 = sbr.rel target = $region3
    $region8: #{tpu_custom_call.1} parent=1 // loop_exit
      _
    %2653 = vsyncpa [#allocation3], 1
    %s2654 = scalar_lea.sflag [#allocation3], 1
    %2655 = vsyncpa %s2654, 1
    %2656 = vsyncpa [#allocation6], 1
    %2657 = vsyncpa [#allocation9], 1
    %2658 = vsyncpa [#allocation12], 1
    %2659 = vsyncpa [#allocation15], 1
    %2660 = vsyncpa [#allocation4], 1
    %s2661 = scalar_lea.sflag [#allocation4], 1
    %2662 = vsyncpa %s2661, 1

</llo_original>
